<compile_context>
chip_gen: v7x
topology: tpu7x:2x2x1
jax: 0.10.0
libtpu: 0.0.40
codegen_flags: <defaults>
</compile_context>

<pallas_src>
import jax
import jax.numpy as jnp
from jax.experimental import pallas as pl
from jax.experimental.pallas import tpu as pltpu


def _round_up(x, m):
    return ((x + m - 1) // m) * m


def _vmem_limit_bytes():
    """Generation-aware scoped-VMEM budget (v5e/v6e: 128 MiB phys, v7x: 64 MiB)."""
    phys = 64 * 1024 * 1024  # conservative default == v7x physical VMEM
    try:
        phys = int(pltpu.get_tpu_info().vmem_capacity_bytes)
    except Exception:
        pass
    return max(16 * 1024 * 1024, min(phys // 2, 64 * 1024 * 1024))


def _pick_rows(H, W_ext, Cin, Cout_pad, vmem_limit, n_batch):
    """Output rows per grid step (multiple of 8), sized to the VMEM budget."""
    lane_cin = max(Cin, 128)               # vreg lane padding of the NHWC window
    k_lane = max(9 * Cin, 128)
    per_row = (
        4 * (W_ext + 2) * lane_cin * 2     # x main block (dbl-buffered) + halo/window temps (bf16)
        + W_ext * k_lane * 2               # assembled 9-tap operand (bf16)
        + 3 * W_ext * Cout_pad * 4         # f32 accumulator + double-buffered out block
    )
    w_bytes = 9 * Cin * Cout_pad * 2
    budget = max(vmem_limit // 2 - 2 * w_bytes, 2 * 1024 * 1024)
    rows = max(8, (budget // per_row) // 8 * 8)
    rows = min(rows, _round_up(H, 8))
    if n_batch == 1:
        # Keep >= 2 parallel tiles so both v7x TensorCores get work.
        rows = min(rows, max(8, _round_up((H + 1) // 2, 8)))
    return int(rows)


def _make_kernel(rows, w_out, cin, kh_kw, single_matmul):
    """Build the fused conv3x3 + BN + ReLU tile kernel (all sizes static)."""
    n_taps = len(kh_kw)

    def kernel(x_main_ref, x_halo_ref, w_ref, b_ref, o_ref):
        # x_main_ref: (1, rows, Wp, Cin)  bf16  -- this tile's rows of the padded image
        # x_halo_ref: (1, 2,    Wp, Cin)  bf16  -- the 2 rows directly below the tile
        # w_ref:      (9*Cin, Cout_pad)   bf16  -- BN-folded weights, VMEM resident
        # b_ref:      (1, Cout_pad)       f32   -- folded BN bias, resident
        # o_ref:      (1, rows*W_ext, Cout_pad) f32
        window = jnp.concatenate([x_main_ref[0], x_halo_ref[0]], axis=0)  # (rows+2, Wp, Cin)
        taps = [window[kh:kh + rows, kw:kw + w_out, :] for kh, kw in kh_kw]
        if single_matmul:
            # Lane-aligned Cin: one lane-dense K = 9*Cin MXU contraction.
            x_col = jnp.concatenate(taps, axis=-1).reshape(rows * w_out, n_taps * cin)
            acc = jnp.dot(x_col, w_ref[...], preferred_element_type=jnp.float32)
        else:
            # Small / lane-unaligned Cin (HBM-bound regime): accumulate per-tap
            # matmuls instead of building an unaligned lane concatenation.
            w_all = w_ref[...]
            acc = None
            for t in range(n_taps):
                part = jnp.dot(taps[t].reshape(rows * w_out, cin),
                               w_all[t * cin:(t + 1) * cin, :],
                               preferred_element_type=jnp.float32)
                acc = part if acc is None else acc + part
        acc = jnp.maximum(acc + b_ref[...], 0.0)          # BN bias + ReLU, f32
        o_ref[0] = acc.astype(o_ref.dtype)

    return kernel


def conv_block_forward(x_nchw, weight_oihw, gamma, beta, running_mean, running_var,
                       eps=1e-4):
    """Forward pass matching torch ConvBlock (eval-mode BN).

    x_nchw:      (N, Cin, H, W) float32
    weight_oihw: (Cout, Cin, 3, 3) float32
    returns      (N, Cout, H, W) float32
    """
    N, Cin, H, W = x_nchw.shape
    Cout, Cin_w, KH, KW = weight_oihw.shape
    assert Cin_w == Cin and KH == 3 and KW == 3, "kernel specialized to 3x3 / padding=1"
    kh_kw = [(kh, kw) for kh in range(KH) for kw in range(KW)]

    vmem_limit = _vmem_limit_bytes()
    Cout_pad = _round_up(Cout, 128)        # lane-dense, unmasked output stores
    W_ext = _round_up(W, 8)                # keeps in-kernel reshapes layout-trivial
    rows = _pick_rows(H, W_ext, Cin, Cout_pad, vmem_limit, N)
    H_ext = _round_up(H, rows)
    R = H_ext // rows
    Wp = W_ext + 2
    K = KH * KW * Cin
    tile_m = rows * W_ext                  # multiple of 64 -> bf16 sublane-friendly

    # ---- BN folding (inference) in f32; cast folded weights once ------------
    scale = gamma / jnp.sqrt(running_var + eps)                    # (Cout,)
    bias = beta - running_mean * scale                             # (Cout,)
    w_hwio = jnp.transpose(weight_oihw, (2, 3, 1, 0))              # (KH,KW,Cin,Cout)
    w_mat = (w_hwio * scale).reshape(K, Cout)
    w_mat = jnp.pad(w_mat, ((0, 0), (0, Cout_pad - Cout))).astype(jnp.bfloat16)
    b_mat = jnp.pad(bias, (0, Cout_pad - Cout)).reshape(1, Cout_pad).astype(jnp.float32)

    # ---- activations: cast to bf16 FIRST, then NHWC + zero pad (~1x traffic) -
    x_nhwc = jnp.transpose(x_nchw.astype(jnp.bfloat16), (0, 2, 3, 1))
    x_pad = jnp.pad(x_nhwc, ((0, 0),
                             (1, H_ext - H + 1),
                             (1, W_ext - W + 1),
                             (0, 0)))                              # (N, H_ext+2, Wp, Cin)

    single_matmul = (Cin % 128 == 0)
    kernel = _make_kernel(rows, W_ext, Cin, kh_kw, single_matmul)

    cost = pl.CostEstimate(
        flops=2 * N * H_ext * W_ext * K * Cout_pad,
        transcendentals=0,
        bytes_accessed=int(x_pad.size * 2                      # main activation stream (bf16)
                           + N * R * 2 * Wp * Cin * 2          # halo rows
                           + w_mat.size * 2 + b_mat.size * 4   # resident weights / bias
                           + N * H_ext * W_ext * Cout_pad * 4  # f32 output
                           ),
    )

    out = pl.pallas_call(
        kernel,
        out_shape=jax.ShapeDtypeStruct((N, H_ext * W_ext, Cout_pad), jnp.float32),
        grid_spec=pltpu.PrefetchScalarGridSpec(
            num_scalar_prefetch=0,
            grid=(N, R),
            in_specs=[
                # rows of the padded image belonging to this tile
                pl.BlockSpec((1, rows, Wp, Cin), lambda n, r: (n, r, 0, 0)),
                # the 2 halo rows just below the tile (same array, block height 2)
                pl.BlockSpec((1, 2, Wp, Cin),
                             lambda n, r: (n, (r + 1) * (rows // 2), 0, 0)),
                # folded weights + bias: constant index_map -> fetched once, resident
                pl.BlockSpec((K, Cout_pad), lambda n, r: (0, 0)),
                pl.BlockSpec((1, Cout_pad), lambda n, r: (0, 0)),
            ],
            out_specs=pl.BlockSpec((1, tile_m, Cout_pad), lambda n, r: (n, r, 0)),
        ),
        compiler_params=pltpu.CompilerParams(
            dimension_semantics=("parallel", "parallel"),
            vmem_limit_bytes=vmem_limit,
        ),
        cost_estimate=cost,
    )(x_pad, x_pad, w_mat, b_mat)

    # Drop the H/W/Cout padding and return NCHW f32 (single fused XLA pass).
    out = out.reshape(N, H_ext, W_ext, Cout_pad)[:, :H, :W, :Cout]
    return jnp.transpose(out, (0, 3, 1, 2))


def _reference(x_nchw, weight_oihw, gamma, beta, running_mean, running_var, eps=1e-4):
    """Pure-JAX f32 reference (lax conv) for verification."""
    y = jax.lax.conv_general_dilated(
        x_nchw, weight_oihw,
        window_strides=(1, 1), padding=((1, 1), (1, 1)),
        dimension_numbers=("NCHW", "OIHW", "NCHW"),
    )
    scale = (gamma / jnp.sqrt(running_var + eps)).reshape(1, -1, 1, 1)
    bias = (beta - running_mean * gamma / jnp.sqrt(running_var + eps)).reshape(1, -1, 1, 1)
    return jnp.maximum(y * scale + bias, 0.0)


if __name__ == "__main__":
    key = jax.random.PRNGKey(0)
    k1, k2, k3, k4, k5, k6 = jax.random.split(key, 6)

    N, Cin, Cout, H, W = 2, 4, 8, 16, 16
    KH = KW = 3

    x = jax.random.normal(k1, (N, Cin, H, W), dtype=jnp.float32)
    # Deterministic parameter init (synthetic, not a checkpoint load).
    fan_in = Cin * KH * KW
    bound = 1.0 / (fan_in ** 0.5)
    weight = jax.random.uniform(k2, (Cout, Cin, KH, KW), jnp.float32, -bound, bound)
    gamma = 1.0 + 0.1 * jax.random.normal(k3, (Cout,), jnp.float32)
    beta = 0.1 * jax.random.normal(k4, (Cout,), jnp.float32)
    running_mean = 0.1 * jax.random.normal(k5, (Cout,), jnp.float32)
    running_var = 1.0 + 0.1 * jax.random.uniform(k6, (Cout,), jnp.float32)

    fwd = jax.jit(conv_block_forward)
    out = jax.block_until_ready(fwd(x, weight, gamma, beta, running_mean, running_var))

    ref = _reference(x, weight, gamma, beta, running_mean, running_var)
    assert out.shape == (N, Cout, H, W)
    # Tolerance accounts for bf16 MXU inputs (f32 accumulation) vs. the f32 reference.
    assert jnp.allclose(out, ref, atol=5e-2, rtol=5e-2), \
        float(jnp.max(jnp.abs(out - ref)))

    print("KERNEL_OK")
</pallas_src>

<mosaic_0001>
module attributes {stable_mosaic.version = 11 : i64} {
  func.func @kernel(%arg0: i32, %arg1: i32, %arg2: memref<1x16x18x4xbf16, #tpu.memory_space<vmem>>, %arg3: memref<1x2x18x4xbf16, #tpu.memory_space<vmem>>, %arg4: memref<36x128xbf16, #tpu.memory_space<vmem>>, %arg5: memref<1x128xf32, #tpu.memory_space<vmem>>, %arg6: memref<1x256x128xf32, #tpu.memory_space<vmem>>) attributes {dimension_semantics = [#tpu.dimension_semantics<parallel>, #tpu.dimension_semantics<parallel>], iteration_bounds = array<i64: 2, 1>, scalar_prefetch = 0 : i64, scratch_operands = 0 : i64, tpu.core_type = #tpu.core_type<tc>, window_params = [{transform_indices = @transform_0, window_bounds = array<i64: 1, 16, 18, 4>}, {transform_indices = @transform_1, window_bounds = array<i64: 1, 2, 18, 4>}, {pipeline_mode = #tpu.pipeline_mode<synchronous>, transform_indices = @transform_2, window_bounds = array<i64: 36, 128>}, {pipeline_mode = #tpu.pipeline_mode<synchronous>, transform_indices = @transform_3, window_bounds = array<i64: 1, 128>}, {transform_indices = @transform_4, window_bounds = array<i64: 1, 256, 128>}]} {
    %c0 = arith.constant 0 : index
    %c0_0 = arith.constant 0 : index
    %c0_1 = arith.constant 0 : index
    %c0_2 = arith.constant 0 : index
    %0 = vector.load %arg2[%c0, %c0_0, %c0_1, %c0_2] : memref<1x16x18x4xbf16, #tpu.memory_space<vmem>>, vector<1x16x18x4xbf16>
    %1 = vector.shape_cast %0 : vector<1x16x18x4xbf16> to vector<16x18x4xbf16>
    %c0_3 = arith.constant 0 : index
    %c0_4 = arith.constant 0 : index
    %c0_5 = arith.constant 0 : index
    %c0_6 = arith.constant 0 : index
    %2 = vector.load %arg3[%c0_3, %c0_4, %c0_5, %c0_6] : memref<1x2x18x4xbf16, #tpu.memory_space<vmem>>, vector<1x2x18x4xbf16>
    %3 = vector.shape_cast %2 : vector<1x2x18x4xbf16> to vector<2x18x4xbf16>
    %4 = tpu.concatenate %1, %3 in 0 : vector<16x18x4xbf16>, vector<2x18x4xbf16> -> vector<18x18x4xbf16>
    %5 = vector.extract_strided_slice %4 {offsets = [0, 0, 0], sizes = [16, 16, 4], strides = [1, 1, 1]} : vector<18x18x4xbf16> to vector<16x16x4xbf16>
    %6 = vector.extract_strided_slice %4 {offsets = [0, 1, 0], sizes = [16, 16, 4], strides = [1, 1, 1]} : vector<18x18x4xbf16> to vector<16x16x4xbf16>
    %7 = vector.extract_strided_slice %4 {offsets = [0, 2, 0], sizes = [16, 16, 4], strides = [1, 1, 1]} : vector<18x18x4xbf16> to vector<16x16x4xbf16>
    %8 = vector.extract_strided_slice %4 {offsets = [1, 0, 0], sizes = [16, 16, 4], strides = [1, 1, 1]} : vector<18x18x4xbf16> to vector<16x16x4xbf16>
    %9 = vector.extract_strided_slice %4 {offsets = [1, 1, 0], sizes = [16, 16, 4], strides = [1, 1, 1]} : vector<18x18x4xbf16> to vector<16x16x4xbf16>
    %10 = vector.extract_strided_slice %4 {offsets = [1, 2, 0], sizes = [16, 16, 4], strides = [1, 1, 1]} : vector<18x18x4xbf16> to vector<16x16x4xbf16>
    %11 = vector.extract_strided_slice %4 {offsets = [2, 0, 0], sizes = [16, 16, 4], strides = [1, 1, 1]} : vector<18x18x4xbf16> to vector<16x16x4xbf16>
    %12 = vector.extract_strided_slice %4 {offsets = [2, 1, 0], sizes = [16, 16, 4], strides = [1, 1, 1]} : vector<18x18x4xbf16> to vector<16x16x4xbf16>
    %13 = vector.extract_strided_slice %4 {offsets = [2, 2, 0], sizes = [16, 16, 4], strides = [1, 1, 1]} : vector<18x18x4xbf16> to vector<16x16x4xbf16>
    %c0_7 = arith.constant 0 : index
    %c0_8 = arith.constant 0 : index
    %14 = vector.load %arg4[%c0_7, %c0_8] : memref<36x128xbf16, #tpu.memory_space<vmem>>, vector<36x128xbf16>
    %15 = vector.shape_cast %5 : vector<16x16x4xbf16> to vector<256x4xbf16>
    %16 = vector.extract_strided_slice %14 {offsets = [0, 0], sizes = [4, 128], strides = [1, 1]} : vector<36x128xbf16> to vector<4x128xbf16>
    %cst = arith.constant dense<0.000000e+00> : vector<256x128xf32>
    %17 = tpu.matmul %15, %16, %cst {dimension_numbers = #tpu.dot_dimension_numbers<[1], [0], [0], [1], [0, 0, 1, 1], [], []>} : vector<256x4xbf16>, vector<4x128xbf16>, vector<256x128xf32> -> vector<256x128xf32>
    %18 = vector.shape_cast %6 : vector<16x16x4xbf16> to vector<256x4xbf16>
    %19 = vector.extract_strided_slice %14 {offsets = [4, 0], sizes = [4, 128], strides = [1, 1]} : vector<36x128xbf16> to vector<4x128xbf16>
    %cst_9 = arith.constant dense<0.000000e+00> : vector<256x128xf32>
    %20 = tpu.matmul %18, %19, %cst_9 {dimension_numbers = #tpu.dot_dimension_numbers<[1], [0], [0], [1], [0, 0, 1, 1], [], []>} : vector<256x4xbf16>, vector<4x128xbf16>, vector<256x128xf32> -> vector<256x128xf32>
    %21 = arith.addf %17, %20 : vector<256x128xf32>
    %22 = vector.shape_cast %7 : vector<16x16x4xbf16> to vector<256x4xbf16>
    %23 = vector.extract_strided_slice %14 {offsets = [8, 0], sizes = [4, 128], strides = [1, 1]} : vector<36x128xbf16> to vector<4x128xbf16>
    %cst_10 = arith.constant dense<0.000000e+00> : vector<256x128xf32>
    %24 = tpu.matmul %22, %23, %cst_10 {dimension_numbers = #tpu.dot_dimension_numbers<[1], [0], [0], [1], [0, 0, 1, 1], [], []>} : vector<256x4xbf16>, vector<4x128xbf16>, vector<256x128xf32> -> vector<256x128xf32>
    %25 = arith.addf %21, %24 : vector<256x128xf32>
    %26 = vector.shape_cast %8 : vector<16x16x4xbf16> to vector<256x4xbf16>
    %27 = vector.extract_strided_slice %14 {offsets = [12, 0], sizes = [4, 128], strides = [1, 1]} : vector<36x128xbf16> to vector<4x128xbf16>
    %cst_11 = arith.constant dense<0.000000e+00> : vector<256x128xf32>
    %28 = tpu.matmul %26, %27, %cst_11 {dimension_numbers = #tpu.dot_dimension_numbers<[1], [0], [0], [1], [0, 0, 1, 1], [], []>} : vector<256x4xbf16>, vector<4x128xbf16>, vector<256x128xf32> -> vector<256x128xf32>
    %29 = arith.addf %25, %28 : vector<256x128xf32>
    %30 = vector.shape_cast %9 : vector<16x16x4xbf16> to vector<256x4xbf16>
    %31 = vector.extract_strided_slice %14 {offsets = [16, 0], sizes = [4, 128], strides = [1, 1]} : vector<36x128xbf16> to vector<4x128xbf16>
    %cst_12 = arith.constant dense<0.000000e+00> : vector<256x128xf32>
    %32 = tpu.matmul %30, %31, %cst_12 {dimension_numbers = #tpu.dot_dimension_numbers<[1], [0], [0], [1], [0, 0, 1, 1], [], []>} : vector<256x4xbf16>, vector<4x128xbf16>, vector<256x128xf32> -> vector<256x128xf32>
    %33 = arith.addf %29, %32 : vector<256x128xf32>
    %34 = vector.shape_cast %10 : vector<16x16x4xbf16> to vector<256x4xbf16>
    %35 = vector.extract_strided_slice %14 {offsets = [20, 0], sizes = [4, 128], strides = [1, 1]} : vector<36x128xbf16> to vector<4x128xbf16>
    %cst_13 = arith.constant dense<0.000000e+00> : vector<256x128xf32>
    %36 = tpu.matmul %34, %35, %cst_13 {dimension_numbers = #tpu.dot_dimension_numbers<[1], [0], [0], [1], [0, 0, 1, 1], [], []>} : vector<256x4xbf16>, vector<4x128xbf16>, vector<256x128xf32> -> vector<256x128xf32>
    %37 = arith.addf %33, %36 : vector<256x128xf32>
    %38 = vector.shape_cast %11 : vector<16x16x4xbf16> to vector<256x4xbf16>
    %39 = vector.extract_strided_slice %14 {offsets = [24, 0], sizes = [4, 128], strides = [1, 1]} : vector<36x128xbf16> to vector<4x128xbf16>
    %cst_14 = arith.constant dense<0.000000e+00> : vector<256x128xf32>
    %40 = tpu.matmul %38, %39, %cst_14 {dimension_numbers = #tpu.dot_dimension_numbers<[1], [0], [0], [1], [0, 0, 1, 1], [], []>} : vector<256x4xbf16>, vector<4x128xbf16>, vector<256x128xf32> -> vector<256x128xf32>
    %41 = arith.addf %37, %40 : vector<256x128xf32>
    %42 = vector.shape_cast %12 : vector<16x16x4xbf16> to vector<256x4xbf16>
    %43 = vector.extract_strided_slice %14 {offsets = [28, 0], sizes = [4, 128], strides = [1, 1]} : vector<36x128xbf16> to vector<4x128xbf16>
    %cst_15 = arith.constant dense<0.000000e+00> : vector<256x128xf32>
    %44 = tpu.matmul %42, %43, %cst_15 {dimension_numbers = #tpu.dot_dimension_numbers<[1], [0], [0], [1], [0, 0, 1, 1], [], []>} : vector<256x4xbf16>, vector<4x128xbf16>, vector<256x128xf32> -> vector<256x128xf32>
    %45 = arith.addf %41, %44 : vector<256x128xf32>
    %46 = vector.shape_cast %13 : vector<16x16x4xbf16> to vector<256x4xbf16>
    %47 = vector.extract_strided_slice %14 {offsets = [32, 0], sizes = [4, 128], strides = [1, 1]} : vector<36x128xbf16> to vector<4x128xbf16>
    %cst_16 = arith.constant dense<0.000000e+00> : vector<256x128xf32>
    %48 = tpu.matmul %46, %47, %cst_16 {dimension_numbers = #tpu.dot_dimension_numbers<[1], [0], [0], [1], [0, 0, 1, 1], [], []>} : vector<256x4xbf16>, vector<4x128xbf16>, vector<256x128xf32> -> vector<256x128xf32>
    %49 = arith.addf %45, %48 : vector<256x128xf32>
    %c0_17 = arith.constant 0 : index
    %c0_18 = arith.constant 0 : index
    %50 = vector.load %arg5[%c0_17, %c0_18] : memref<1x128xf32, #tpu.memory_space<vmem>>, vector<1x128xf32>
    %51 = vector.broadcast %50 : vector<1x128xf32> to vector<256x128xf32>
    %52 = arith.addf %49, %51 : vector<256x128xf32>
    %cst_19 = arith.constant 0.000000e+00 : f32
    %53 = vector.broadcast %cst_19 : f32 to vector<256x128xf32>
    %54 = arith.maximumf %52, %53 : vector<256x128xf32>
    %c0_20 = arith.constant 0 : index
    %c0_21 = arith.constant 0 : index
    %c0_22 = arith.constant 0 : index
    %55 = vector.load %arg6[%c0_20, %c0_21, %c0_22] : memref<1x256x128xf32, #tpu.memory_space<vmem>>, vector<1x256x128xf32>
    %56 = vector.shape_cast %55 : vector<1x256x128xf32> to vector<256x128xf32>
    %57 = vector.shape_cast %54 : vector<256x128xf32> to vector<1x256x128xf32>
    tpu.vector_store %arg6[%c0_20, %c0_21, %c0_22], %57 {strides = array<i32>} : memref<1x256x128xf32, #tpu.memory_space<vmem>>, vector<1x256x128xf32>,
    return
  }
  func.func @transform_0(%arg0: i32, %arg1: i32) -> (i32, i32, i32, i32) {
    %c0_i32 = arith.constant 0 : i32
    %c0_i32_0 = arith.constant 0 : i32
    %c0_i32_1 = arith.constant 0 : i32
    return %arg0, %arg1, %c0_i32, %c0_i32_0 : i32, i32, i32, i32
  }
  func.func @transform_1(%arg0: i32, %arg1: i32) -> (i32, i32, i32, i32) {
    %c1_i32 = arith.constant 1 : i32
    %0 = arith.addi %arg1, %c1_i32 : i32
    %c8_i32 = arith.constant 8 : i32
    %1 = arith.muli %0, %c8_i32 : i32
    %c0_i32 = arith.constant 0 : i32
    %c0_i32_0 = arith.constant 0 : i32
    %c0_i32_1 = arith.constant 0 : i32
    return %arg0, %1, %c0_i32, %c0_i32_0 : i32, i32, i32, i32
  }
  func.func @transform_2(%arg0: i32, %arg1: i32) -> (i32, i32) {
    %c0_i32 = arith.constant 0 : i32
    %c0_i32_0 = arith.constant 0 : i32
    %c0_i32_1 = arith.constant 0 : i32
    return %c0_i32, %c0_i32_0 : i32, i32
  }
  func.func @transform_3(%arg0: i32, %arg1: i32) -> (i32, i32) {
    %c0_i32 = arith.constant 0 : i32
    %c0_i32_0 = arith.constant 0 : i32
    %c0_i32_1 = arith.constant 0 : i32
    return %c0_i32, %c0_i32_0 : i32, i32
  }
  func.func @transform_4(%arg0: i32, %arg1: i32) -> (i32, i32, i32) {
    %c0_i32 = arith.constant 0 : i32
    %c0_i32_0 = arith.constant 0 : i32
    return %arg0, %arg1, %c0_i32 : i32, i32, i32
  }
}

</mosaic_0001>

<llo_original>
// kernel: conv_block_forward.1
$region0: #{conv_block_forward.1}
  #allocation0 [shape = 'u32[]', space=smem, size = 0x4, offset = 0x4, fixed_abs, tag = 'smem constant byte address 0x4 - core index']
  #allocation1 [shape = 'u32[144,128]{1,0:T(1,128)}', space=vmem, size = 0x12000, scoped, tag = 'internal scratch']
  %s0 = inlined_call_operand.vmem [shape: bf16[2,18,18,4], index: 0, kind: input, shape index: {}, may-alias: {0,1}]
  %s1 = inlined_call_operand.vmem [shape: bf16[2,18,18,4], index: 1, kind: input, shape index: {}, may-alias: {0,1}]
  %s2 = inlined_call_operand.vmem [shape: bf16[36,128], index: 2, kind: input, shape index: {}]
  %s3 = inlined_call_operand.vmem [shape: f32[1,128], index: 3, kind: input, shape index: {}]
  %s4 = inlined_call_operand.vmem [shape: f32[2,256,128], index: 4, kind: output, shape index: {}]
  %s5 = sld [smem:[#allocation0]]
  $region49: #{conv_block_forward.1} parent=0
    _
  %s7 = ssub.s32 1, %s5
  %s8 = scalar_select 0, %s7, %s5
  loop: start=0, step=1, limit=4
  $region2: #{conv_block_forward.1} parent=0 // loop_pre_header
    _
  $region3: #{conv_block_forward.1} parent=0 // loop_header
    %s10 = sphi 0, %s14
    %p11 = scmp.ge.s32.totalorder %s10, 4
    %s17 = sphi 0, %s29
    %s18 = sphi 0, %s25
    %s19 = sphi 0, %s17
    %s20 = sphi 0, %s18
    %s21 = sphi 0, %s19
    %s22 = sphi 0, %s20
    %s34 = sphi 0, %s36
    %s37 = sphi 0, %s34
    %s38 = sphi 0, %s37
    %s54 = sphi 0, %s38
    %s66 = sphi 0, %s68
    %s69 = sphi 0, %s66
    %s70 = sphi 0, %s69
    %s86 = sphi 0, %s70
    %s90 = sphi 0, %s90
    %s92 = sphi 0, %s90
    %s93 = sphi 0, %s92
    %s107 = sphi 0, %s93
    %s111 = sphi 0, %s111
    %s113 = sphi 0, %s111
    %s114 = sphi 0, %s113
    %s128 = sphi 0, %s114
    %s136 = sphi 0, %s138
    %s139 = sphi 0, %s136
    %s140 = sphi 0, %s139
    %s156 = sphi 0, %s140
  $region4: #{conv_block_forward.1} parent=0 // loop_header_branch
    %13 = sbr.rel (%p11) target = $region8
  $region5: #{conv_block_forward.1} parent=0 // loop_body
    %s15 = ssub.s32 %s10, 1
    %s16 = ssub.s32 %s10, 2
    %s23 = sadd.s32 1, %s18
    %p24 = scmp.ge.s32.totalorder %s23, 1
    %s25 = scalar_select %p24, 0, %s23
    %s26 = sadd.s32 1, %s17
    %s27 = scalar_select %p24, %s26, %s17
    %p28 = scmp.ge.s32.totalorder %s27, 2
    %s29 = scalar_select %p28, 0, %s27
    %s30 = ssub.s32 %s17, %s29
    %s31 = ssub.s32 %s18, %s25
    %s32 = sor.u32 %s30, %s31
    %p33 = scmp.eq.s32.totalorder %s32, 0
    %s35 = sadd.s32 %s34, 1
    %s36 = scalar_select %p33, %s34, %s35
    %p39 = pneg %p33
    %p40 = scmp.eq.s32.totalorder %s10, 1
    %p41 = por %p39, %p40
    %p42 = scmp.ne.s32.totalorder %s34, %s37
    %p43 = scmp.eq.s32.totalorder %s10, 0
    %p44 = por %p42, %p43
    %p45 = scmp.ne.s32.totalorder %s34, %s37
    %p46 = scmp.eq.s32.totalorder %s15, 1
    %p47 = por %p45, %p46
    %p48 = scmp.ne.s32.totalorder %s37, %s38
    %p49 = scmp.eq.s32.totalorder %s15, 0
    %p50 = por %p48, %p49
    %p51 = scmp.ne.s32.totalorder %s37, %s38
    %p52 = scmp.eq.s32.totalorder %s16, 1
    %p53 = por %p51, %p52
    %p55 = scmp.ne.s32.totalorder %s38, %s54
    %p56 = scmp.eq.s32.totalorder %s16, 0
    %p57 = por %p55, %p56
    %s58 = sadd.s32 %s18, 1
    %s59 = smul.u32 %s58, 8
    %s60 = sadd.s32 %s25, 1
    %s61 = smul.u32 %s60, 8
    %s62 = ssub.s32 %s17, %s29
    %s63 = ssub.s32 %s59, %s61
    %s64 = sor.u32 %s62, %s63
    %p65 = scmp.eq.s32.totalorder %s64, 0
    %s67 = sadd.s32 %s66, 1
    %s68 = scalar_select %p65, %s66, %s67
    %p71 = pneg %p65
    %p72 = scmp.eq.s32.totalorder %s10, 1
    %p73 = por %p71, %p72
    %p74 = scmp.ne.s32.totalorder %s66, %s69
    %p75 = scmp.eq.s32.totalorder %s10, 0
    %p76 = por %p74, %p75
    %p77 = scmp.ne.s32.totalorder %s66, %s69
    %p78 = scmp.eq.s32.totalorder %s15, 1
    %p79 = por %p77, %p78
    %p80 = scmp.ne.s32.totalorder %s69, %s70
    %p81 = scmp.eq.s32.totalorder %s15, 0
    %p82 = por %p80, %p81
    %p83 = scmp.ne.s32.totalorder %s69, %s70
    %p84 = scmp.eq.s32.totalorder %s16, 1
    %p85 = por %p83, %p84
    %p87 = scmp.ne.s32.totalorder %s70, %s86
    %p88 = scmp.eq.s32.totalorder %s16, 0
    %p89 = por %p87, %p88
    %s91 = sadd.s32 %s90, 1
    %p94 = scmp.eq.s32.totalorder %s10, 1
    %p95 = scmp.ne.s32.totalorder %s90, %s92
    %p96 = scmp.eq.s32.totalorder %s10, 0
    %p97 = por %p95, %p96
    %p98 = scmp.ne.s32.totalorder %s90, %s92
    %p99 = scmp.eq.s32.totalorder %s15, 1
    %p100 = por %p98, %p99
    %p101 = scmp.ne.s32.totalorder %s92, %s93
    %p102 = scmp.eq.s32.totalorder %s15, 0
    %p103 = por %p101, %p102
    %p104 = scmp.ne.s32.totalorder %s92, %s93
    %p105 = scmp.eq.s32.totalorder %s16, 1
    %p106 = por %p104, %p105
    %p108 = scmp.ne.s32.totalorder %s93, %s107
    %p109 = scmp.eq.s32.totalorder %s16, 0
    %p110 = por %p108, %p109
    %s112 = sadd.s32 %s111, 1
    %p115 = scmp.eq.s32.totalorder %s10, 1
    %p116 = scmp.ne.s32.totalorder %s111, %s113
    %p117 = scmp.eq.s32.totalorder %s10, 0
    %p118 = por %p116, %p117
    %p119 = scmp.ne.s32.totalorder %s111, %s113
    %p120 = scmp.eq.s32.totalorder %s15, 1
    %p121 = por %p119, %p120
    %p122 = scmp.ne.s32.totalorder %s113, %s114
    %p123 = scmp.eq.s32.totalorder %s15, 0
    %p124 = por %p122, %p123
    %p125 = scmp.ne.s32.totalorder %s113, %s114
    %p126 = scmp.eq.s32.totalorder %s16, 1
    %p127 = por %p125, %p126
    %p129 = scmp.ne.s32.totalorder %s114, %s128
    %p130 = scmp.eq.s32.totalorder %s16, 0
    %p131 = por %p129, %p130
    %s132 = ssub.s32 %s17, %s29
    %s133 = ssub.s32 %s18, %s25
    %s134 = sor.u32 %s132, %s133
    %p135 = scmp.eq.s32.totalorder %s134, 0
    %s137 = sadd.s32 %s136, 1
    %s138 = scalar_select %p135, %s136, %s137
    %p141 = pneg %p135
    %p142 = scmp.eq.s32.totalorder %s10, 1
    %p143 = por %p141, %p142
    %p144 = scmp.ne.s32.totalorder %s136, %s139
    %p145 = scmp.eq.s32.totalorder %s10, 0
    %p146 = por %p144, %p145
    %p147 = scmp.ne.s32.totalorder %s136, %s139
    %p148 = scmp.eq.s32.totalorder %s15, 1
    %p149 = por %p147, %p148
    %p150 = scmp.ne.s32.totalorder %s139, %s140
    %p151 = scmp.eq.s32.totalorder %s15, 0
    %p152 = por %p150, %p151
    %p153 = scmp.ne.s32.totalorder %s139, %s140
    %p154 = scmp.eq.s32.totalorder %s16, 1
    %p155 = por %p153, %p154
    %p157 = scmp.ne.s32.totalorder %s140, %s156
    %p158 = scmp.eq.s32.totalorder %s16, 0
    %p159 = por %p157, %p158
    %p160 = scmp.le.s32.totalorder 1, %s10
    %p161 = scmp.lt.s32.totalorder %s10, 3
    %p162 = pnand %p160, %p161
    %p163 = pneg %p162
    // Predicated region
    $region9: #{conv_block_forward.1} parent=5 // pred_check
      _
    $region10: #{conv_block_forward.1} parent=5 // pred_check_branch
      %165 = sbr.rel (%p162) target = $region12
    $region11: #{conv_block_forward.1} parent=5 // pred_region
      %s166 = ssub.s32 %s10, 1
      // Predicated region
      $region13: #{conv_block_forward.1} parent=11 // pred_check
        %p167 = pneg %p103
      $region14: #{conv_block_forward.1} parent=11 // pred_check_branch
        %169 = sbr.rel (%p167) target = $region16
      $region15: #{conv_block_forward.1} parent=11 // pred_region
        _
      $region16: #{conv_block_forward.1} parent=11 // pred_fallthru
        _
      // Predicated region
      $region17: #{conv_block_forward.1} parent=11 // pred_check
        %p170 = pneg %p124
      $region18: #{conv_block_forward.1} parent=11 // pred_check_branch
        %172 = sbr.rel (%p170) target = $region20
      $region19: #{conv_block_forward.1} parent=11 // pred_region
        _
      $region20: #{conv_block_forward.1} parent=11 // pred_fallthru
        _
    $region12: #{conv_block_forward.1} parent=5 // pred_fallthru
      _
    %p173 = scmp.lt.s32.totalorder %s10, 2
    // Predicated region
    $region21: #{conv_block_forward.1} parent=5 // pred_check
      %p174 = pneg %p173
    $region22: #{conv_block_forward.1} parent=5 // pred_check_branch
      %176 = sbr.rel (%p174) target = $region24
    $region23: #{conv_block_forward.1} parent=5 // pred_region
      // Predicated region
      $region25: #{conv_block_forward.1} parent=23 // pred_check
        %p177 = pneg %p44
      $region26: #{conv_block_forward.1} parent=23 // pred_check_branch
        %179 = sbr.rel (%p177) target = $region28
      $region27: #{conv_block_forward.1} parent=23 // pred_region
        %s180 = smul.u32 16, %s18
        %s181 = ssub.s32 18, %s180
        %p182 = scmp.lt.s32.totalorder %s181, 16
        %s183 = scalar_select %p182, %s181, 16
        %s184 = smul.u32 64, %s183
        %s185 = smul.u32 %s184, 3
        %p186 = scmp.lt.s32.totalorder %s17, 1
        %s187 = scalar_select %p186, %s17, 1
        %p188 = scmp.lt.s32.totalorder %s180, 17
        %s189 = scalar_select %p188, %s180, 17
        %s190 = smul.addr %s189, 3
        %s191 = smul.addr %s187, 54
        %s192 = sadd.s32 %s190, %s191
        %s193 = smul.addr %s192, 4
        %s194 = scalar_lea.vmem %s0, %s193
        %s195 = smul.u32 16, %s18
        %s196 = ssub.s32 18, %s195
        %p197 = scmp.lt.s32.totalorder %s196, 16
        %s198 = scalar_select %p197, %s196, 16
        %s199 = smul.u32 64, %s198
        %s200 = smul.u32 %s199, 3
      $region28: #{conv_block_forward.1} parent=23 // pred_fallthru
        _
      // Predicated region
      $region29: #{conv_block_forward.1} parent=23 // pred_check
        %p201 = pneg %p76
      $region30: #{conv_block_forward.1} parent=23 // pred_check_branch
        %203 = sbr.rel (%p201) target = $region32
      $region31: #{conv_block_forward.1} parent=23 // pred_region
        %s204 = sadd.s32 %s18, 1
        %s205 = smul.u32 %s204, 8
        %s206 = smul.u32 2, %s205
        %p207 = scmp.lt.s32.totalorder %s17, 1
        %s208 = scalar_select %p207, %s17, 1
        %p209 = scmp.lt.s32.totalorder %s206, 17
        %s210 = scalar_select %p209, %s206, 17
        %s211 = smul.addr %s210, 3
        %s212 = smul.addr %s208, 54
        %s213 = sadd.s32 %s211, %s212
        %s214 = smul.addr %s213, 4
        %s215 = scalar_lea.vmem %s1, %s214
        %s216 = sadd.s32 %s18, 1
        %s217 = smul.u32 %s216, 8
        %s218 = smul.u32 2, %s217
      $region32: #{conv_block_forward.1} parent=23 // pred_fallthru
        _
    $region24: #{conv_block_forward.1} parent=5 // pred_fallthru
      _
    %p219 = scmp.le.s32.totalorder 1, %s10
    %p220 = scmp.lt.s32.totalorder %s10, 3
    %p221 = pnand %p219, %p220
    %p222 = pneg %p221
    // Predicated region
    $region33: #{conv_block_forward.1} parent=5 // pred_check
      _
    $region34: #{conv_block_forward.1} parent=5 // pred_check_branch
      %224 = sbr.rel (%p221) target = $region36
    $region35: #{conv_block_forward.1} parent=5 // pred_region
      %s225 = ssub.s32 %s10, 1
      %s226 = smul.u32 16, %s20
      %s227 = ssub.s32 18, %s226
      %p228 = scmp.lt.s32.totalorder %s227, 16
      %s229 = scalar_select %p228, %s227, 16
      %s230 = smul.u32 64, %s229
      %s231 = smul.u32 %s230, 3
      %p232 = scmp.lt.s32.totalorder %s19, 1
      %s233 = scalar_select %p232, %s19, 1
      %p234 = scmp.lt.s32.totalorder %s226, 17
      %s235 = scalar_select %p234, %s226, 17
      %s236 = smul.addr %s235, 3
      %s237 = smul.addr %s233, 54
      %s238 = sadd.s32 %s236, %s237
      %s239 = smul.addr %s238, 4
      %s240 = scalar_lea.vmem %s0, %s239
      %p241 = pneg %p50
      %p242 = pneg %p47
      %s243 = sadd.s32 %s20, 1
      %s244 = smul.u32 %s243, 8
      %s245 = smul.u32 2, %s244
      %p246 = scmp.lt.s32.totalorder %s19, 1
      %s247 = scalar_select %p246, %s19, 1
      %p248 = scmp.lt.s32.totalorder %s245, 17
      %s249 = scalar_select %p248, %s245, 17
      %s250 = smul.addr %s249, 3
      %s251 = smul.addr %s247, 54
      %s252 = sadd.s32 %s250, %s251
      %s253 = smul.addr %s252, 4
      %s254 = scalar_lea.vmem %s1, %s253
      %p255 = pneg %p82
      %p256 = pneg %p79
      %p257 = pneg %p103
      %p258 = pneg %p100
      %p259 = pneg %p124
      %p260 = pneg %p121
      %p261 = pneg %p152
      %p262 = pneg %p149
      %s263 = smul.u32 32, %s20
      %p264 = scmp.lt.s32.totalorder %s19, 1
      %s265 = scalar_select %p264, %s19, 1
      %p266 = scmp.lt.s32.totalorder %s263, 31
      %s267 = scalar_select %p266, %s263, 31
      %s268 = smul.addr %s265, 32
      %s269 = sadd.s32 %s267, %s268
      %s270 = smul.addr %s269, 8
      %s271 = scalar_lea.vmem %s4, %s270
      %s272 = smul.u32 16, %s20
      %s273 = ssub.s32 18, %s272
      %p274 = scmp.lt.s32.totalorder %s273, 16
      %s275 = scalar_select %p274, %s273, 16
      %s276 = smul.u32 64, %s275
      %s277 = smul.u32 %s276, 3
      %p278 = scmp.lt.s32.totalorder %s19, 1
      %s279 = scalar_select %p278, %s19, 1
      %p280 = scmp.lt.s32.totalorder %s272, 17
      %s281 = scalar_select %p280, %s272, 17
      %s282 = smul.addr %s281, 3
      %s283 = smul.addr %s279, 54
      %s284 = sadd.s32 %s282, %s283
      %s285 = smul.addr %s284, 4
      %s286 = scalar_lea.vmem %s0, %s285
      %s287 = smul.u32 16, %s20
      %s288 = ssub.s32 18, %s287
      %p289 = scmp.lt.s32.totalorder %s288, 16
      %s290 = scalar_select %p289, %s288, 16
      %s291 = smul.u32 64, %s290
      %s292 = smul.u32 %s291, 3
      %s293 = sadd.s32 %s20, 1
      %s294 = smul.u32 %s293, 8
      %s295 = smul.u32 2, %s294
      %p296 = scmp.lt.s32.totalorder %s19, 1
      %s297 = scalar_select %p296, %s19, 1
      %p298 = scmp.lt.s32.totalorder %s295, 17
      %s299 = scalar_select %p298, %s295, 17
      %s300 = smul.addr %s299, 3
      %s301 = smul.addr %s297, 54
      %s302 = sadd.s32 %s300, %s301
      %s303 = smul.addr %s302, 4
      %s304 = scalar_lea.vmem %s1, %s303
      %s305 = sadd.s32 %s20, 1
      %s306 = smul.u32 %s305, 8
      %s307 = smul.u32 2, %s306
      %s308 = smul.u32 32, %s20
      %p309 = scmp.lt.s32.totalorder %s19, 1
      %s310 = scalar_select %p309, %s19, 1
      %p311 = scmp.lt.s32.totalorder %s308, 31
      %s312 = scalar_select %p311, %s308, 31
      %s313 = smul.addr %s310, 32
      %s314 = sadd.s32 %s312, %s313
      %s315 = smul.addr %s314, 8
      %s316 = scalar_lea.vmem %s4, %s315
      %s317 = smul.u32 32, %s20
      %v319 = vld [vmem:[%s286] sm:$0xf]
      %v320 = vld [vmem:[%s286 + $0x4] sm:$0xf]
      %v321 = vld [vmem:[%s286 + $0x8] sm:$0x1]
      %v322 = vld [vmem:[%s286 + $0xc] sm:$0xf]
      %v323 = vld [vmem:[%s286 + $0x10] sm:$0xf]
      %v324 = vld [vmem:[%s286 + $0x14] sm:$0x1]
      %v325 = vld [vmem:[%s286 + $0x18] sm:$0xf]
      %v326 = vld [vmem:[%s286 + $0x1c] sm:$0xf]
      %v327 = vld [vmem:[%s286 + $0x20] sm:$0x1]
      %v328 = vld [vmem:[%s286 + $0x24] sm:$0xf]
      %v329 = vld [vmem:[%s286 + $0x28] sm:$0xf]
      %v330 = vld [vmem:[%s286 + $0x2c] sm:$0x1]
      %v331 = vld [vmem:[%s286 + $0x30] sm:$0xf]
      %v332 = vld [vmem:[%s286 + $0x34] sm:$0xf]
      %v333 = vld [vmem:[%s286 + $0x38] sm:$0x1]
      %v334 = vld [vmem:[%s286 + $0x3c] sm:$0xf]
      %v335 = vld [vmem:[%s286 + $0x40] sm:$0xf]
      %v336 = vld [vmem:[%s286 + $0x44] sm:$0x1]
      %v337 = vld [vmem:[%s286 + $0x48] sm:$0xf]
      %v338 = vld [vmem:[%s286 + $0x4c] sm:$0xf]
      %v339 = vld [vmem:[%s286 + $0x50] sm:$0x1]
      %v340 = vld [vmem:[%s286 + $0x54] sm:$0xf]
      %v341 = vld [vmem:[%s286 + $0x58] sm:$0xf]
      %v342 = vld [vmem:[%s286 + $0x5c] sm:$0x1]
      %v343 = vld [vmem:[%s286 + $0x60] sm:$0xf]
      %v344 = vld [vmem:[%s286 + $0x64] sm:$0xf]
      %v345 = vld [vmem:[%s286 + $0x68] sm:$0x1]
      %v346 = vld [vmem:[%s286 + $0x6c] sm:$0xf]
      %v347 = vld [vmem:[%s286 + $0x70] sm:$0xf]
      %v348 = vld [vmem:[%s286 + $0x74] sm:$0x1]
      %v349 = vld [vmem:[%s286 + $0x78] sm:$0xf]
      %v350 = vld [vmem:[%s286 + $0x7c] sm:$0xf]
      %v351 = vld [vmem:[%s286 + $0x80] sm:$0x1]
      %v352 = vld [vmem:[%s286 + $0x84] sm:$0xf]
      %v353 = vld [vmem:[%s286 + $0x88] sm:$0xf]
      %v354 = vld [vmem:[%s286 + $0x8c] sm:$0x1]
      %v355 = vld [vmem:[%s286 + $0x90] sm:$0xf]
      %v356 = vld [vmem:[%s286 + $0x94] sm:$0xf]
      %v357 = vld [vmem:[%s286 + $0x98] sm:$0x1]
      %v358 = vld [vmem:[%s286 + $0x9c] sm:$0xf]
      %v359 = vld [vmem:[%s286 + $0xa0] sm:$0xf]
      %v360 = vld [vmem:[%s286 + $0xa4] sm:$0x1]
      %v361 = vld [vmem:[%s286 + $0xa8] sm:$0xf]
      %v362 = vld [vmem:[%s286 + $0xac] sm:$0xf]
      %v363 = vld [vmem:[%s286 + $0xb0] sm:$0x1]
      %v364 = vld [vmem:[%s286 + $0xb4] sm:$0xf]
      %v365 = vld [vmem:[%s286 + $0xb8] sm:$0xf]
      %v366 = vld [vmem:[%s286 + $0xbc] sm:$0x1]
      %v367 = vld [vmem:[%s304] sm:$0xf]
      %v368 = vld [vmem:[%s304 + $0x4] sm:$0xf]
      %v369 = vld [vmem:[%s304 + $0x8] sm:$0x1]
      %v370 = vld [vmem:[%s304 + $0xc] sm:$0xf]
      %v371 = vld [vmem:[%s304 + $0x10] sm:$0xf]
      %v372 = vld [vmem:[%s304 + $0x14] sm:$0x1]
      %v373 = vld [vmem:[%s2] sm:$0xf]
      %v374 = vld [vmem:[%s2 + $0x4] sm:$0xf]
      %v375 = vld [vmem:[%s2 + $0x8] sm:$0xf]
      %v376 = vld [vmem:[%s2 + $0xc] sm:$0xf]
      %v377 = vld [vmem:[%s2 + $0x10] sm:$0x3]
      %vm378 = vsmask.f32 3328
      %vm379 = vsmask.f32 7440
      %vm380 = vmor %vm378, %vm379
      %v382 = vshrl.u32 %v319, 16
      %v384 = vrot.slane %v382, 4
      %v385 = vshll.u32 %v319, 16
      %v387 = vrot.slane %v385, 5
      %v388 = vor.u32 %v384, %v387
      %v389 = vrot.slane %v388, 4
      %v391 = vshll.u32 %v320, 16
      %v393 = vrot.slane %v391, 5
      %v394 = vsel %vm380, %v389, %v393
      %v395 = vshrl.u32 %v320, 16
      %v397 = vrot.slane %v395, 4
      %v398 = vor.u32 %v397, %v393
      %v399 = vrot.slane %v398, 4
      %v401 = vshll.u32 %v321, 16
      %v403 = vrot.slane %v401, 5
      %v404 = vsel %vm380, %v399, %v403
      %v406 = vshrl.u32 %v322, 16
      %v408 = vrot.slane %v406, 4
      %v409 = vshll.u32 %v322, 16
      %v411 = vrot.slane %v409, 5
      %v412 = vor.u32 %v408, %v411
      %v413 = vrot.slane %v412, 4
      %v415 = vshll.u32 %v323, 16
      %v417 = vrot.slane %v415, 5
      %v418 = vsel %vm380, %v413, %v417
      %v419 = vshrl.u32 %v323, 16
      %v421 = vrot.slane %v419, 4
      %v422 = vor.u32 %v421, %v417
      %v423 = vrot.slane %v422, 4
      %v425 = vshll.u32 %v324, 16
      %v427 = vrot.slane %v425, 5
      %v428 = vsel %vm380, %v423, %v427
      %v430 = vshrl.u32 %v325, 16
      %v432 = vrot.slane %v430, 4
      %v433 = vshll.u32 %v325, 16
      %v435 = vrot.slane %v433, 5
      %v436 = vor.u32 %v432, %v435
      %v437 = vrot.slane %v436, 4
      %v439 = vshll.u32 %v326, 16
      %v441 = vrot.slane %v439, 5
      %v442 = vsel %vm380, %v437, %v441
      %v443 = vshrl.u32 %v326, 16
      %v445 = vrot.slane %v443, 4
      %v446 = vor.u32 %v445, %v441
      %v447 = vrot.slane %v446, 4
      %v449 = vshll.u32 %v327, 16
      %v451 = vrot.slane %v449, 5
      %v452 = vsel %vm380, %v447, %v451
      %v454 = vshrl.u32 %v328, 16
      %v456 = vrot.slane %v454, 4
      %v457 = vshll.u32 %v328, 16
      %v459 = vrot.slane %v457, 5
      %v460 = vor.u32 %v456, %v459
      %v461 = vrot.slane %v460, 4
      %v463 = vshll.u32 %v329, 16
      %v465 = vrot.slane %v463, 5
      %v466 = vsel %vm380, %v461, %v465
      %v467 = vshrl.u32 %v329, 16
      %v469 = vrot.slane %v467, 4
      %v470 = vor.u32 %v469, %v465
      %v471 = vrot.slane %v470, 4
      %v473 = vshll.u32 %v330, 16
      %v475 = vrot.slane %v473, 5
      %v476 = vsel %vm380, %v471, %v475
      %v478 = vshrl.u32 %v331, 16
      %v480 = vrot.slane %v478, 4
      %v481 = vshll.u32 %v331, 16
      %v483 = vrot.slane %v481, 5
      %v484 = vor.u32 %v480, %v483
      %v485 = vrot.slane %v484, 4
      %v487 = vshll.u32 %v332, 16
      %v489 = vrot.slane %v487, 5
      %v490 = vsel %vm380, %v485, %v489
      %v491 = vshrl.u32 %v332, 16
      %v493 = vrot.slane %v491, 4
      %v494 = vor.u32 %v493, %v489
      %v495 = vrot.slane %v494, 4
      %v497 = vshll.u32 %v333, 16
      %v499 = vrot.slane %v497, 5
      %v500 = vsel %vm380, %v495, %v499
      %v502 = vshrl.u32 %v334, 16
      %v504 = vrot.slane %v502, 4
      %v505 = vshll.u32 %v334, 16
      %v507 = vrot.slane %v505, 5
      %v508 = vor.u32 %v504, %v507
      %v509 = vrot.slane %v508, 4
      %v511 = vshll.u32 %v335, 16
      %v513 = vrot.slane %v511, 5
      %v514 = vsel %vm380, %v509, %v513
      %v515 = vshrl.u32 %v335, 16
      %v517 = vrot.slane %v515, 4
      %v518 = vor.u32 %v517, %v513
      %v519 = vrot.slane %v518, 4
      %v521 = vshll.u32 %v336, 16
      %v523 = vrot.slane %v521, 5
      %v524 = vsel %vm380, %v519, %v523
      %v526 = vshrl.u32 %v337, 16
      %v528 = vrot.slane %v526, 4
      %v529 = vshll.u32 %v337, 16
      %v531 = vrot.slane %v529, 5
      %v532 = vor.u32 %v528, %v531
      %v533 = vrot.slane %v532, 4
      %v535 = vshll.u32 %v338, 16
      %v537 = vrot.slane %v535, 5
      %v538 = vsel %vm380, %v533, %v537
      %v539 = vshrl.u32 %v338, 16
      %v541 = vrot.slane %v539, 4
      %v542 = vor.u32 %v541, %v537
      %v543 = vrot.slane %v542, 4
      %v545 = vshll.u32 %v339, 16
      %v547 = vrot.slane %v545, 5
      %v548 = vsel %vm380, %v543, %v547
      %v550 = vshrl.u32 %v340, 16
      %v552 = vrot.slane %v550, 4
      %v553 = vshll.u32 %v340, 16
      %v555 = vrot.slane %v553, 5
      %v556 = vor.u32 %v552, %v555
      %v557 = vrot.slane %v556, 4
      %v559 = vshll.u32 %v341, 16
      %v561 = vrot.slane %v559, 5
      %v562 = vsel %vm380, %v557, %v561
      %v563 = vshrl.u32 %v341, 16
      %v565 = vrot.slane %v563, 4
      %v566 = vor.u32 %v565, %v561
      %v567 = vrot.slane %v566, 4
      %v569 = vshll.u32 %v342, 16
      %v571 = vrot.slane %v569, 5
      %v572 = vsel %vm380, %v567, %v571
      %v574 = vshrl.u32 %v343, 16
      %v576 = vrot.slane %v574, 4
      %v577 = vshll.u32 %v343, 16
      %v579 = vrot.slane %v577, 5
      %v580 = vor.u32 %v576, %v579
      %v581 = vrot.slane %v580, 4
      %v583 = vshll.u32 %v344, 16
      %v585 = vrot.slane %v583, 5
      %v586 = vsel %vm380, %v581, %v585
      %v587 = vshrl.u32 %v344, 16
      %v589 = vrot.slane %v587, 4
      %v590 = vor.u32 %v589, %v585
      %v591 = vrot.slane %v590, 4
      %v593 = vshll.u32 %v345, 16
      %v595 = vrot.slane %v593, 5
      %v596 = vsel %vm380, %v591, %v595
      %v598 = vshrl.u32 %v346, 16
      %v600 = vrot.slane %v598, 4
      %v601 = vshll.u32 %v346, 16
      %v603 = vrot.slane %v601, 5
      %v604 = vor.u32 %v600, %v603
      %v605 = vrot.slane %v604, 4
      %v607 = vshll.u32 %v347, 16
      %v609 = vrot.slane %v607, 5
      %v610 = vsel %vm380, %v605, %v609
      %v611 = vshrl.u32 %v347, 16
      %v613 = vrot.slane %v611, 4
      %v614 = vor.u32 %v613, %v609
      %v615 = vrot.slane %v614, 4
      %v617 = vshll.u32 %v348, 16
      %v619 = vrot.slane %v617, 5
      %v620 = vsel %vm380, %v615, %v619
      %v622 = vshrl.u32 %v349, 16
      %v624 = vrot.slane %v622, 4
      %v625 = vshll.u32 %v349, 16
      %v627 = vrot.slane %v625, 5
      %v628 = vor.u32 %v624, %v627
      %v629 = vrot.slane %v628, 4
      %v631 = vshll.u32 %v350, 16
      %v633 = vrot.slane %v631, 5
      %v634 = vsel %vm380, %v629, %v633
      %v635 = vshrl.u32 %v350, 16
      %v637 = vrot.slane %v635, 4
      %v638 = vor.u32 %v637, %v633
      %v639 = vrot.slane %v638, 4
      %v641 = vshll.u32 %v351, 16
      %v643 = vrot.slane %v641, 5
      %v644 = vsel %vm380, %v639, %v643
      %v646 = vshrl.u32 %v352, 16
      %v648 = vrot.slane %v646, 4
      %v649 = vshll.u32 %v352, 16
      %v651 = vrot.slane %v649, 5
      %v652 = vor.u32 %v648, %v651
      %v653 = vrot.slane %v652, 4
      %v655 = vshll.u32 %v353, 16
      %v657 = vrot.slane %v655, 5
      %v658 = vsel %vm380, %v653, %v657
      %v659 = vshrl.u32 %v353, 16
      %v661 = vrot.slane %v659, 4
      %v662 = vor.u32 %v661, %v657
      %v663 = vrot.slane %v662, 4
      %v665 = vshll.u32 %v354, 16
      %v667 = vrot.slane %v665, 5
      %v668 = vsel %vm380, %v663, %v667
      %v670 = vshrl.u32 %v355, 16
      %v672 = vrot.slane %v670, 4
      %v673 = vshll.u32 %v355, 16
      %v675 = vrot.slane %v673, 5
      %v676 = vor.u32 %v672, %v675
      %v677 = vrot.slane %v676, 4
      %v679 = vshll.u32 %v356, 16
      %v681 = vrot.slane %v679, 5
      %v682 = vsel %vm380, %v677, %v681
      %v683 = vshrl.u32 %v356, 16
      %v685 = vrot.slane %v683, 4
      %v686 = vor.u32 %v685, %v681
      %v687 = vrot.slane %v686, 4
      %v689 = vshll.u32 %v357, 16
      %v691 = vrot.slane %v689, 5
      %v692 = vsel %vm380, %v687, %v691
      %v694 = vshrl.u32 %v358, 16
      %v696 = vrot.slane %v694, 4
      %v697 = vshll.u32 %v358, 16
      %v699 = vrot.slane %v697, 5
      %v700 = vor.u32 %v696, %v699
      %v701 = vrot.slane %v700, 4
      %v703 = vshll.u32 %v359, 16
      %v705 = vrot.slane %v703, 5
      %v706 = vsel %vm380, %v701, %v705
      %v707 = vshrl.u32 %v359, 16
      %v709 = vrot.slane %v707, 4
      %v710 = vor.u32 %v709, %v705
      %v711 = vrot.slane %v710, 4
      %v713 = vshll.u32 %v360, 16
      %v715 = vrot.slane %v713, 5
      %v716 = vsel %vm380, %v711, %v715
      %v718 = vshrl.u32 %v361, 16
      %v720 = vrot.slane %v718, 4
      %v721 = vshll.u32 %v361, 16
      %v723 = vrot.slane %v721, 5
      %v724 = vor.u32 %v720, %v723
      %v725 = vrot.slane %v724, 4
      %v727 = vshll.u32 %v362, 16
      %v729 = vrot.slane %v727, 5
      %v730 = vsel %vm380, %v725, %v729
      %v731 = vshrl.u32 %v362, 16
      %v733 = vrot.slane %v731, 4
      %v734 = vor.u32 %v733, %v729
      %v735 = vrot.slane %v734, 4
      %v737 = vshll.u32 %v363, 16
      %v739 = vrot.slane %v737, 5
      %v740 = vsel %vm380, %v735, %v739
      %v742 = vshrl.u32 %v364, 16
      %v744 = vrot.slane %v742, 4
      %v745 = vshll.u32 %v364, 16
      %v747 = vrot.slane %v745, 5
      %v748 = vor.u32 %v744, %v747
      %v749 = vrot.slane %v748, 4
      %v751 = vshll.u32 %v365, 16
      %v753 = vrot.slane %v751, 5
      %v754 = vsel %vm380, %v749, %v753
      %v755 = vshrl.u32 %v365, 16
      %v757 = vrot.slane %v755, 4
      %v758 = vor.u32 %v757, %v753
      %v759 = vrot.slane %v758, 4
      %v761 = vshll.u32 %v366, 16
      %v763 = vrot.slane %v761, 5
      %v764 = vsel %vm380, %v759, %v763
      %v765 = vunpack.c.l.b16 %v394
      %v766 = vunpack.c.l.b16 %v404
      %v767 = vunpack.c.l.b16 %v418
      %v768 = vunpack.c.l.b16 %v428
      %v769 = vunpack.c.l.b16 %v442
      %v770 = vunpack.c.l.b16 %v452
      %v771 = vunpack.c.l.b16 %v466
      %v772 = vunpack.c.l.b16 %v476
      %v773 = vunpack.c.l.b16 %v490
      %v774 = vunpack.c.l.b16 %v500
      %v775 = vunpack.c.l.b16 %v514
      %v776 = vunpack.c.l.b16 %v524
      %v777 = vunpack.c.l.b16 %v538
      %v778 = vunpack.c.l.b16 %v548
      %v779 = vunpack.c.l.b16 %v562
      %v780 = vunpack.c.l.b16 %v572
      %v781 = vunpack.c.l.b16 %v586
      %v782 = vunpack.c.l.b16 %v596
      %v783 = vunpack.c.l.b16 %v610
      %v784 = vunpack.c.l.b16 %v620
      %v785 = vunpack.c.l.b16 %v634
      %v786 = vunpack.c.l.b16 %v644
      %v787 = vunpack.c.l.b16 %v658
      %v788 = vunpack.c.l.b16 %v668
      %v789 = vunpack.c.l.b16 %v682
      %v790 = vunpack.c.l.b16 %v692
      %v791 = vunpack.c.l.b16 %v706
      %v792 = vunpack.c.l.b16 %v716
      %v793 = vunpack.c.l.b16 %v730
      %v794 = vunpack.c.l.b16 %v740
      %v795 = vunpack.c.l.b16 %v754
      %v796 = vunpack.c.l.b16 %v764
      %v797 = vpack.c.b16 %v766, %v765
      %v798 = vpack.c.b16 %v768, %v767
      %v799 = vpack.c.b16 %v770, %v769
      %v800 = vpack.c.b16 %v772, %v771
      %v801 = vpack.c.b16 %v774, %v773
      %v802 = vpack.c.b16 %v776, %v775
      %v803 = vpack.c.b16 %v778, %v777
      %v804 = vpack.c.b16 %v780, %v779
      %v805 = vpack.c.b16 %v782, %v781
      %v806 = vpack.c.b16 %v784, %v783
      %v807 = vpack.c.b16 %v786, %v785
      %v808 = vpack.c.b16 %v788, %v787
      %v809 = vpack.c.b16 %v790, %v789
      %v810 = vpack.c.b16 %v792, %v791
      %v811 = vpack.c.b16 %v794, %v793
      %v812 = vpack.c.b16 %v796, %v795
      %v814 = vunpack.c.l.b16 %v373
      %v815 = vpack.c.b16 %v814, %v814
      %v816 = vrot.slane %v815, 2
      %vm817 = vcmask 31744
      %v819 = vsel %vm817, %v797, 0
      %v822 = vsel %vm817, %v798, 0
      %v825 = vsel %vm817, %v799, 0
      %v828 = vsel %vm817, %v800, 0
      %v831 = vsel %vm817, %v801, 0
      %v834 = vsel %vm817, %v802, 0
      %v837 = vsel %vm817, %v803, 0
      %v840 = vsel %vm817, %v804, 0
      %v843 = vsel %vm817, %v805, 0
      %v846 = vsel %vm817, %v806, 0
      %v849 = vsel %vm817, %v807, 0
      %v852 = vsel %vm817, %v808, 0
      %v855 = vsel %vm817, %v809, 0
      %v858 = vsel %vm817, %v810, 0
      %v861 = vsel %vm817, %v811, 0
      %v864 = vsel %vm817, %v812, 0
      %vm866 = vcmask 1041408
      %v868 = vsel %vm866, %v816, 0
      %870 = vmatprep.subr.bf16.mxu0 0
      %871 = vmatpush1.bf16.msra.mxu0 %v868
      %872 = vmatprep.subr.bf16.mxu0 0
      %873 = vmatpush1.bf16.msra.mxu0 0
      %874 = vmatprep.subr.bf16.mxu0 0
      %875 = vmatpush1.bf16.msra.mxu0 0
      %876 = vmatprep.subr.bf16.mxu0 0
      %877 = vmatpush1.bf16.msra.mxu0 0
      %878 = vmatprep.subr.bf16.mxu0 0
      %879 = vmatpush1.bf16.msra.mxu0 0
      %880 = vmatprep.subr.bf16.mxu0 0
      %881 = vmatpush1.bf16.msra.mxu0 0
      %882 = vmatprep.subr.bf16.mxu0 0
      %883 = vmatpush1.bf16.msra.mxu0 0
      %884 = vmatprep.subr.bf16.mxu0 0
      %885 = vmatpush1.bf16.msra.mxu0 0
      %886 = vmatprep.subr.bf16.mxu0 0
      %887 = vmatpush1.bf16.msra.mxu0 0
      %888 = vmatprep.subr.bf16.mxu0 0
      %889 = vmatpush1.bf16.msra.mxu0 0
      %890 = vmatprep.subr.bf16.mxu0 0
      %891 = vmatpush1.bf16.msra.mxu0 0
      %892 = vmatprep.subr.bf16.mxu0 0
      %893 = vmatpush1.bf16.msra.mxu0 0
      %894 = vmatprep.subr.bf16.mxu0 0
      %895 = vmatpush1.bf16.msra.mxu0 0
      %896 = vmatprep.subr.bf16.mxu0 0
      %897 = vmatpush1.bf16.msra.mxu0 0
      %898 = vmatprep.subr.bf16.mxu0 0
      %899 = vmatpush1.bf16.msra.mxu0 0
      %900 = vmatprep.subr.bf16.mxu0 0
      %901 = vmatpush1.bf16.msra.mxu0 0
      %902 = vmatprep.mubr.bf16.mxu0 0
      %903 = vmatmul.mubr.bf16.gmra.mrb[0].mxu0 %v819
      %v904 = vpop.f32.mrb[0].mxu0
      %v905 = vadd.f32 0.0, %v904
      %v906 = vpop.f32.mrb[0].mxu0
      %v907 = vpop.f32.mrb[0].mxu0
      %v908 = vadd.f32 0.0, %v907
      %v909 = vpop.f32.mrb[0].mxu0
      %910 = vmatprep.mubr.bf16.mxu0 0
      %911 = vmatmul.mubr.bf16.gmra.mrb[0].mxu0 %v822
      %v912 = vpop.f32.mrb[0].mxu0
      %v913 = vadd.f32 0.0, %v912
      %v914 = vpop.f32.mrb[0].mxu0
      %v915 = vpop.f32.mrb[0].mxu0
      %v916 = vadd.f32 0.0, %v915
      %v917 = vpop.f32.mrb[0].mxu0
      %918 = vmatprep.mubr.bf16.mxu0 0
      %919 = vmatmul.mubr.bf16.gmra.mrb[0].mxu0 %v825
      %v920 = vpop.f32.mrb[0].mxu0
      %v921 = vadd.f32 0.0, %v920
      %v922 = vpop.f32.mrb[0].mxu0
      %v923 = vpop.f32.mrb[0].mxu0
      %v924 = vadd.f32 0.0, %v923
      %v925 = vpop.f32.mrb[0].mxu0
      %926 = vmatprep.mubr.bf16.mxu0 0
      %927 = vmatmul.mubr.bf16.gmra.mrb[0].mxu0 %v828
      %v928 = vpop.f32.mrb[0].mxu0
      %v929 = vadd.f32 0.0, %v928
      %v930 = vpop.f32.mrb[0].mxu0
      %v931 = vpop.f32.mrb[0].mxu0
      %v932 = vadd.f32 0.0, %v931
      %v933 = vpop.f32.mrb[0].mxu0
      %934 = vmatprep.mubr.bf16.mxu0 0
      %935 = vmatmul.mubr.bf16.gmra.mrb[0].mxu0 %v831
      %v936 = vpop.f32.mrb[0].mxu0
      %v937 = vadd.f32 0.0, %v936
      %v938 = vpop.f32.mrb[0].mxu0
      %v939 = vpop.f32.mrb[0].mxu0
      %v940 = vadd.f32 0.0, %v939
      %v941 = vpop.f32.mrb[0].mxu0
      %942 = vmatprep.mubr.bf16.mxu0 0
      %943 = vmatmul.mubr.bf16.gmra.mrb[0].mxu0 %v834
      %v944 = vpop.f32.mrb[0].mxu0
      %v945 = vadd.f32 0.0, %v944
      %v946 = vpop.f32.mrb[0].mxu0
      %v947 = vpop.f32.mrb[0].mxu0
      %v948 = vadd.f32 0.0, %v947
      %v949 = vpop.f32.mrb[0].mxu0
      %950 = vmatprep.mubr.bf16.mxu0 0
      %951 = vmatmul.mubr.bf16.gmra.mrb[0].mxu0 %v837
      %v952 = vpop.f32.mrb[0].mxu0
      %v953 = vadd.f32 0.0, %v952
      %v954 = vpop.f32.mrb[0].mxu0
      %v955 = vpop.f32.mrb[0].mxu0
      %v956 = vadd.f32 0.0, %v955
      %v957 = vpop.f32.mrb[0].mxu0
      %958 = vmatprep.mubr.bf16.mxu0 0
      %959 = vmatmul.mubr.bf16.gmra.mrb[0].mxu0 %v840
      %v960 = vpop.f32.mrb[0].mxu0
      %v961 = vadd.f32 0.0, %v960
      %v962 = vpop.f32.mrb[0].mxu0
      %v963 = vpop.f32.mrb[0].mxu0
      %v964 = vadd.f32 0.0, %v963
      %v965 = vpop.f32.mrb[0].mxu0
      %966 = vmatprep.mubr.bf16.mxu0 0
      %967 = vmatmul.mubr.bf16.gmra.mrb[0].mxu0 %v843
      %v968 = vpop.f32.mrb[0].mxu0
      %v969 = vadd.f32 0.0, %v968
      %v970 = vpop.f32.mrb[0].mxu0
      %v971 = vpop.f32.mrb[0].mxu0
      %v972 = vadd.f32 0.0, %v971
      %v973 = vpop.f32.mrb[0].mxu0
      %974 = vmatprep.mubr.bf16.mxu0 0
      %975 = vmatmul.mubr.bf16.gmra.mrb[0].mxu0 %v846
      %v976 = vpop.f32.mrb[0].mxu0
      %v977 = vadd.f32 0.0, %v976
      %v978 = vpop.f32.mrb[0].mxu0
      %v979 = vpop.f32.mrb[0].mxu0
      %v980 = vadd.f32 0.0, %v979
      %v981 = vpop.f32.mrb[0].mxu0
      %982 = vmatprep.mubr.bf16.mxu0 0
      %983 = vmatmul.mubr.bf16.gmra.mrb[0].mxu0 %v849
      %v984 = vpop.f32.mrb[0].mxu0
      %v985 = vadd.f32 0.0, %v984
      %v986 = vpop.f32.mrb[0].mxu0
      %v987 = vpop.f32.mrb[0].mxu0
      %v988 = vadd.f32 0.0, %v987
      %v989 = vpop.f32.mrb[0].mxu0
      %990 = vmatprep.mubr.bf16.mxu0 0
      %991 = vmatmul.mubr.bf16.gmra.mrb[0].mxu0 %v852
      %v992 = vpop.f32.mrb[0].mxu0
      %v993 = vadd.f32 0.0, %v992
      %v994 = vpop.f32.mrb[0].mxu0
      %v995 = vpop.f32.mrb[0].mxu0
      %v996 = vadd.f32 0.0, %v995
      %v997 = vpop.f32.mrb[0].mxu0
      %998 = vmatprep.mubr.bf16.mxu0 0
      %999 = vmatmul.mubr.bf16.gmra.mrb[0].mxu0 %v855
      %v1000 = vpop.f32.mrb[0].mxu0
      %v1001 = vadd.f32 0.0, %v1000
      %v1002 = vpop.f32.mrb[0].mxu0
      %v1003 = vpop.f32.mrb[0].mxu0
      %v1004 = vadd.f32 0.0, %v1003
      %v1005 = vpop.f32.mrb[0].mxu0
      %1006 = vmatprep.mubr.bf16.mxu0 0
      %1007 = vmatmul.mubr.bf16.gmra.mrb[0].mxu0 %v858
      %v1008 = vpop.f32.mrb[0].mxu0
      %v1009 = vadd.f32 0.0, %v1008
      %v1010 = vpop.f32.mrb[0].mxu0
      %v1011 = vpop.f32.mrb[0].mxu0
      %v1012 = vadd.f32 0.0, %v1011
      %v1013 = vpop.f32.mrb[0].mxu0
      %1014 = vmatprep.mubr.bf16.mxu0 0
      %1015 = vmatmul.mubr.bf16.gmra.mrb[0].mxu0 %v861
      %v1016 = vpop.f32.mrb[0].mxu0
      %v1017 = vadd.f32 0.0, %v1016
      %v1018 = vpop.f32.mrb[0].mxu0
      %v1019 = vpop.f32.mrb[0].mxu0
      %v1020 = vadd.f32 0.0, %v1019
      %v1021 = vpop.f32.mrb[0].mxu0
      %1022 = vmatprep.mubr.bf16.mxu0 0
      %1023 = vmatmul.mubr.bf16.gmra.mrb[0].mxu0 %v864
      %v1024 = vpop.f32.mrb[0].mxu0
      %v1025 = vadd.f32 0.0, %v1024
      %v1026 = vpop.f32.mrb[0].mxu0
      %v1027 = vpop.f32.mrb[0].mxu0
      %v1028 = vadd.f32 0.0, %v1027
      %v1029 = vpop.f32.mrb[0].mxu0
      %1030 = vdwg.mxu0
      %v1063 = vunpack.c.l.b16 %v319
      %v1064 = vunpack.c.l.b16 %v320
      %v1065 = vunpack.c.l.b16 %v322
      %v1066 = vunpack.c.l.b16 %v323
      %v1067 = vunpack.c.l.b16 %v325
      %v1068 = vunpack.c.l.b16 %v326
      %v1069 = vunpack.c.l.b16 %v328
      %v1070 = vunpack.c.l.b16 %v329
      %v1071 = vunpack.c.l.b16 %v331
      %v1072 = vunpack.c.l.b16 %v332
      %v1073 = vunpack.c.l.b16 %v334
      %v1074 = vunpack.c.l.b16 %v335
      %v1075 = vunpack.c.l.b16 %v337
      %v1076 = vunpack.c.l.b16 %v338
      %v1077 = vunpack.c.l.b16 %v340
      %v1078 = vunpack.c.l.b16 %v341
      %v1079 = vunpack.c.l.b16 %v343
      %v1080 = vunpack.c.l.b16 %v344
      %v1081 = vunpack.c.l.b16 %v346
      %v1082 = vunpack.c.l.b16 %v347
      %v1083 = vunpack.c.l.b16 %v349
      %v1084 = vunpack.c.l.b16 %v350
      %v1085 = vunpack.c.l.b16 %v352
      %v1086 = vunpack.c.l.b16 %v353
      %v1087 = vunpack.c.l.b16 %v355
      %v1088 = vunpack.c.l.b16 %v356
      %v1089 = vunpack.c.l.b16 %v358
      %v1090 = vunpack.c.l.b16 %v359
      %v1091 = vunpack.c.l.b16 %v361
      %v1092 = vunpack.c.l.b16 %v362
      %v1093 = vunpack.c.l.b16 %v364
      %v1094 = vunpack.c.l.b16 %v365
      %v1095 = vpack.c.b16 %v1064, %v1063
      %v1096 = vpack.c.b16 %v1066, %v1065
      %v1097 = vpack.c.b16 %v1068, %v1067
      %v1098 = vpack.c.b16 %v1070, %v1069
      %v1099 = vpack.c.b16 %v1072, %v1071
      %v1100 = vpack.c.b16 %v1074, %v1073
      %v1101 = vpack.c.b16 %v1076, %v1075
      %v1102 = vpack.c.b16 %v1078, %v1077
      %v1103 = vpack.c.b16 %v1080, %v1079
      %v1104 = vpack.c.b16 %v1082, %v1081
      %v1105 = vpack.c.b16 %v1084, %v1083
      %v1106 = vpack.c.b16 %v1086, %v1085
      %v1107 = vpack.c.b16 %v1088, %v1087
      %v1108 = vpack.c.b16 %v1090, %v1089
      %v1109 = vpack.c.b16 %v1092, %v1091
      %v1110 = vpack.c.b16 %v1094, %v1093
      %v1112 = vsel %vm817, %v1095, 0
      %v1115 = vsel %vm817, %v1096, 0
      %v1118 = vsel %vm817, %v1097, 0
      %v1121 = vsel %vm817, %v1098, 0
      %v1124 = vsel %vm817, %v1099, 0
      %v1127 = vsel %vm817, %v1100, 0
      %v1130 = vsel %vm817, %v1101, 0
      %v1133 = vsel %vm817, %v1102, 0
      %v1136 = vsel %vm817, %v1103, 0
      %v1139 = vsel %vm817, %v1104, 0
      %v1142 = vsel %vm817, %v1105, 0
      %v1145 = vsel %vm817, %v1106, 0
      %v1148 = vsel %vm817, %v1107, 0
      %v1151 = vsel %vm817, %v1108, 0
      %v1154 = vsel %vm817, %v1109, 0
      %v1157 = vsel %vm817, %v1110, 0
      %v1160 = vsel %vm866, %v373, 0
      %1162 = vmatprep.subr.bf16.mxu0 0
      %1163 = vmatpush1.bf16.msra.mxu0 %v1160
      %1164 = vmatprep.subr.bf16.mxu0 0
      %1165 = vmatpush1.bf16.msra.mxu0 0
      %1166 = vmatprep.subr.bf16.mxu0 0
      %1167 = vmatpush1.bf16.msra.mxu0 0
      %1168 = vmatprep.subr.bf16.mxu0 0
      %1169 = vmatpush1.bf16.msra.mxu0 0
      %1170 = vmatprep.subr.bf16.mxu0 0
      %1171 = vmatpush1.bf16.msra.mxu0 0
      %1172 = vmatprep.subr.bf16.mxu0 0
      %1173 = vmatpush1.bf16.msra.mxu0 0
      %1174 = vmatprep.subr.bf16.mxu0 0
      %1175 = vmatpush1.bf16.msra.mxu0 0
      %1176 = vmatprep.subr.bf16.mxu0 0
      %1177 = vmatpush1.bf16.msra.mxu0 0
      %1178 = vmatprep.subr.bf16.mxu0 0
      %1179 = vmatpush1.bf16.msra.mxu0 0
      %1180 = vmatprep.subr.bf16.mxu0 0
      %1181 = vmatpush1.bf16.msra.mxu0 0
      %1182 = vmatprep.subr.bf16.mxu0 0
      %1183 = vmatpush1.bf16.msra.mxu0 0
      %1184 = vmatprep.subr.bf16.mxu0 0
      %1185 = vmatpush1.bf16.msra.mxu0 0
      %1186 = vmatprep.subr.bf16.mxu0 0
      %1187 = vmatpush1.bf16.msra.mxu0 0
      %1188 = vmatprep.subr.bf16.mxu0 0
      %1189 = vmatpush1.bf16.msra.mxu0 0
      %1190 = vmatprep.subr.bf16.mxu0 0
      %1191 = vmatpush1.bf16.msra.mxu0 0
      %1192 = vmatprep.subr.bf16.mxu0 0
      %1193 = vmatpush1.bf16.msra.mxu0 0
      %1194 = vmatprep.mubr.bf16.mxu0 0
      %1195 = vmatmul.mubr.bf16.gmra.mrb[0].mxu0 %v1112
      %v1196 = vpop.f32.mrb[0].mxu0
      %v1197 = vadd.f32 %v905, %v1196
      %v1198 = vpop.f32.mrb[0].mxu0
      %v1199 = vpop.f32.mrb[0].mxu0
      %v1200 = vadd.f32 %v908, %v1199
      %v1201 = vpop.f32.mrb[0].mxu0
      %1202 = vmatprep.mubr.bf16.mxu0 0
      %1203 = vmatmul.mubr.bf16.gmra.mrb[0].mxu0 %v1115
      %v1204 = vpop.f32.mrb[0].mxu0
      %v1205 = vadd.f32 %v913, %v1204
      %v1206 = vpop.f32.mrb[0].mxu0
      %v1207 = vpop.f32.mrb[0].mxu0
      %v1208 = vadd.f32 %v916, %v1207
      %v1209 = vpop.f32.mrb[0].mxu0
      %1210 = vmatprep.mubr.bf16.mxu0 0
      %1211 = vmatmul.mubr.bf16.gmra.mrb[0].mxu0 %v1118
      %v1212 = vpop.f32.mrb[0].mxu0
      %v1213 = vadd.f32 %v921, %v1212
      %v1214 = vpop.f32.mrb[0].mxu0
      %v1215 = vpop.f32.mrb[0].mxu0
      %v1216 = vadd.f32 %v924, %v1215
      %v1217 = vpop.f32.mrb[0].mxu0
      %1218 = vmatprep.mubr.bf16.mxu0 0
      %1219 = vmatmul.mubr.bf16.gmra.mrb[0].mxu0 %v1121
      %v1220 = vpop.f32.mrb[0].mxu0
      %v1221 = vadd.f32 %v929, %v1220
      %v1222 = vpop.f32.mrb[0].mxu0
      %v1223 = vpop.f32.mrb[0].mxu0
      %v1224 = vadd.f32 %v932, %v1223
      %v1225 = vpop.f32.mrb[0].mxu0
      %1226 = vmatprep.mubr.bf16.mxu0 0
      %1227 = vmatmul.mubr.bf16.gmra.mrb[0].mxu0 %v1124
      %v1228 = vpop.f32.mrb[0].mxu0
      %v1229 = vadd.f32 %v937, %v1228
      %v1230 = vpop.f32.mrb[0].mxu0
      %v1231 = vpop.f32.mrb[0].mxu0
      %v1232 = vadd.f32 %v940, %v1231
      %v1233 = vpop.f32.mrb[0].mxu0
      %1234 = vmatprep.mubr.bf16.mxu0 0
      %1235 = vmatmul.mubr.bf16.gmra.mrb[0].mxu0 %v1127
      %v1236 = vpop.f32.mrb[0].mxu0
      %v1237 = vadd.f32 %v945, %v1236
      %v1238 = vpop.f32.mrb[0].mxu0
      %v1239 = vpop.f32.mrb[0].mxu0
      %v1240 = vadd.f32 %v948, %v1239
      %v1241 = vpop.f32.mrb[0].mxu0
      %1242 = vmatprep.mubr.bf16.mxu0 0
      %1243 = vmatmul.mubr.bf16.gmra.mrb[0].mxu0 %v1130
      %v1244 = vpop.f32.mrb[0].mxu0
      %v1245 = vadd.f32 %v953, %v1244
      %v1246 = vpop.f32.mrb[0].mxu0
      %v1247 = vpop.f32.mrb[0].mxu0
      %v1248 = vadd.f32 %v956, %v1247
      %v1249 = vpop.f32.mrb[0].mxu0
      %1250 = vmatprep.mubr.bf16.mxu0 0
      %1251 = vmatmul.mubr.bf16.gmra.mrb[0].mxu0 %v1133
      %v1252 = vpop.f32.mrb[0].mxu0
      %v1253 = vadd.f32 %v961, %v1252
      %v1254 = vpop.f32.mrb[0].mxu0
      %v1255 = vpop.f32.mrb[0].mxu0
      %v1256 = vadd.f32 %v964, %v1255
      %v1257 = vpop.f32.mrb[0].mxu0
      %1258 = vmatprep.mubr.bf16.mxu0 0
      %1259 = vmatmul.mubr.bf16.gmra.mrb[0].mxu0 %v1136
      %v1260 = vpop.f32.mrb[0].mxu0
      %v1261 = vadd.f32 %v969, %v1260
      %v1262 = vpop.f32.mrb[0].mxu0
      %v1263 = vpop.f32.mrb[0].mxu0
      %v1264 = vadd.f32 %v972, %v1263
      %v1265 = vpop.f32.mrb[0].mxu0
      %1266 = vmatprep.mubr.bf16.mxu0 0
      %1267 = vmatmul.mubr.bf16.gmra.mrb[0].mxu0 %v1139
      %v1268 = vpop.f32.mrb[0].mxu0
      %v1269 = vadd.f32 %v977, %v1268
      %v1270 = vpop.f32.mrb[0].mxu0
      %v1271 = vpop.f32.mrb[0].mxu0
      %v1272 = vadd.f32 %v980, %v1271
      %v1273 = vpop.f32.mrb[0].mxu0
      %1274 = vmatprep.mubr.bf16.mxu0 0
      %1275 = vmatmul.mubr.bf16.gmra.mrb[0].mxu0 %v1142
      %v1276 = vpop.f32.mrb[0].mxu0
      %v1277 = vadd.f32 %v985, %v1276
      %v1278 = vpop.f32.mrb[0].mxu0
      %v1279 = vpop.f32.mrb[0].mxu0
      %v1280 = vadd.f32 %v988, %v1279
      %v1281 = vpop.f32.mrb[0].mxu0
      %1282 = vmatprep.mubr.bf16.mxu0 0
      %1283 = vmatmul.mubr.bf16.gmra.mrb[0].mxu0 %v1145
      %v1284 = vpop.f32.mrb[0].mxu0
      %v1285 = vadd.f32 %v993, %v1284
      %v1286 = vpop.f32.mrb[0].mxu0
      %v1287 = vpop.f32.mrb[0].mxu0
      %v1288 = vadd.f32 %v996, %v1287
      %v1289 = vpop.f32.mrb[0].mxu0
      %1290 = vmatprep.mubr.bf16.mxu0 0
      %1291 = vmatmul.mubr.bf16.gmra.mrb[0].mxu0 %v1148
      %v1292 = vpop.f32.mrb[0].mxu0
      %v1293 = vadd.f32 %v1001, %v1292
      %v1294 = vpop.f32.mrb[0].mxu0
      %v1295 = vpop.f32.mrb[0].mxu0
      %v1296 = vadd.f32 %v1004, %v1295
      %v1297 = vpop.f32.mrb[0].mxu0
      %1298 = vmatprep.mubr.bf16.mxu0 0
      %1299 = vmatmul.mubr.bf16.gmra.mrb[0].mxu0 %v1151
      %v1300 = vpop.f32.mrb[0].mxu0
      %v1301 = vadd.f32 %v1009, %v1300
      %v1302 = vpop.f32.mrb[0].mxu0
      %v1303 = vpop.f32.mrb[0].mxu0
      %v1304 = vadd.f32 %v1012, %v1303
      %v1305 = vpop.f32.mrb[0].mxu0
      %1306 = vmatprep.mubr.bf16.mxu0 0
      %1307 = vmatmul.mubr.bf16.gmra.mrb[0].mxu0 %v1154
      %v1308 = vpop.f32.mrb[0].mxu0
      %v1309 = vadd.f32 %v1017, %v1308
      %v1310 = vpop.f32.mrb[0].mxu0
      %v1311 = vpop.f32.mrb[0].mxu0
      %v1312 = vadd.f32 %v1020, %v1311
      %v1313 = vpop.f32.mrb[0].mxu0
      %1314 = vmatprep.mubr.bf16.mxu0 0
      %1315 = vmatmul.mubr.bf16.gmra.mrb[0].mxu0 %v1157
      %v1316 = vpop.f32.mrb[0].mxu0
      %v1317 = vadd.f32 %v1025, %v1316
      %v1318 = vpop.f32.mrb[0].mxu0
      %v1319 = vpop.f32.mrb[0].mxu0
      %v1320 = vadd.f32 %v1028, %v1319
      %v1321 = vpop.f32.mrb[0].mxu0
      %1322 = vdwg.mxu0
      %vm1339 = vcmask 1042432
      %vm1340 = vcmask 1046532
      %vm1341 = vmor %vm1339, %vm1340
      %v1342 = vrot.slane %v319, 5
      %v1343 = vrot.slane %v1342, 4
      %v1344 = vrot.slane %v320, 5
      %v1345 = vsel %vm1341, %v1343, %v1344
      %v1346 = vrot.slane %v1344, 4
      %v1347 = vrot.slane %v321, 5
      %v1348 = vsel %vm1341, %v1346, %v1347
      %v1349 = vrot.slane %v322, 5
      %v1350 = vrot.slane %v1349, 4
      %v1351 = vrot.slane %v323, 5
      %v1352 = vsel %vm1341, %v1350, %v1351
      %v1353 = vrot.slane %v1351, 4
      %v1354 = vrot.slane %v324, 5
      %v1355 = vsel %vm1341, %v1353, %v1354
      %v1356 = vrot.slane %v325, 5
      %v1357 = vrot.slane %v1356, 4
      %v1358 = vrot.slane %v326, 5
      %v1359 = vsel %vm1341, %v1357, %v1358
      %v1360 = vrot.slane %v1358, 4
      %v1361 = vrot.slane %v327, 5
      %v1362 = vsel %vm1341, %v1360, %v1361
      %v1363 = vrot.slane %v328, 5
      %v1364 = vrot.slane %v1363, 4
      %v1365 = vrot.slane %v329, 5
      %v1366 = vsel %vm1341, %v1364, %v1365
      %v1367 = vrot.slane %v1365, 4
      %v1368 = vrot.slane %v330, 5
      %v1369 = vsel %vm1341, %v1367, %v1368
      %v1370 = vrot.slane %v331, 5
      %v1371 = vrot.slane %v1370, 4
      %v1372 = vrot.slane %v332, 5
      %v1373 = vsel %vm1341, %v1371, %v1372
      %v1374 = vrot.slane %v1372, 4
      %v1375 = vrot.slane %v333, 5
      %v1376 = vsel %vm1341, %v1374, %v1375
      %v1377 = vrot.slane %v334, 5
      %v1378 = vrot.slane %v1377, 4
      %v1379 = vrot.slane %v335, 5
      %v1380 = vsel %vm1341, %v1378, %v1379
      %v1381 = vrot.slane %v1379, 4
      %v1382 = vrot.slane %v336, 5
      %v1383 = vsel %vm1341, %v1381, %v1382
      %v1384 = vrot.slane %v337, 5
      %v1385 = vrot.slane %v1384, 4
      %v1386 = vrot.slane %v338, 5
      %v1387 = vsel %vm1341, %v1385, %v1386
      %v1388 = vrot.slane %v1386, 4
      %v1389 = vrot.slane %v339, 5
      %v1390 = vsel %vm1341, %v1388, %v1389
      %v1391 = vrot.slane %v340, 5
      %v1392 = vrot.slane %v1391, 4
      %v1393 = vrot.slane %v341, 5
      %v1394 = vsel %vm1341, %v1392, %v1393
      %v1395 = vrot.slane %v1393, 4
      %v1396 = vrot.slane %v342, 5
      %v1397 = vsel %vm1341, %v1395, %v1396
      %v1398 = vrot.slane %v343, 5
      %v1399 = vrot.slane %v1398, 4
      %v1400 = vrot.slane %v344, 5
      %v1401 = vsel %vm1341, %v1399, %v1400
      %v1402 = vrot.slane %v1400, 4
      %v1403 = vrot.slane %v345, 5
      %v1404 = vsel %vm1341, %v1402, %v1403
      %v1405 = vrot.slane %v346, 5
      %v1406 = vrot.slane %v1405, 4
      %v1407 = vrot.slane %v347, 5
      %v1408 = vsel %vm1341, %v1406, %v1407
      %v1409 = vrot.slane %v1407, 4
      %v1410 = vrot.slane %v348, 5
      %v1411 = vsel %vm1341, %v1409, %v1410
      %v1412 = vrot.slane %v349, 5
      %v1413 = vrot.slane %v1412, 4
      %v1414 = vrot.slane %v350, 5
      %v1415 = vsel %vm1341, %v1413, %v1414
      %v1416 = vrot.slane %v1414, 4
      %v1417 = vrot.slane %v351, 5
      %v1418 = vsel %vm1341, %v1416, %v1417
      %v1419 = vrot.slane %v352, 5
      %v1420 = vrot.slane %v1419, 4
      %v1421 = vrot.slane %v353, 5
      %v1422 = vsel %vm1341, %v1420, %v1421
      %v1423 = vrot.slane %v1421, 4
      %v1424 = vrot.slane %v354, 5
      %v1425 = vsel %vm1341, %v1423, %v1424
      %v1426 = vrot.slane %v355, 5
      %v1427 = vrot.slane %v1426, 4
      %v1428 = vrot.slane %v356, 5
      %v1429 = vsel %vm1341, %v1427, %v1428
      %v1430 = vrot.slane %v1428, 4
      %v1431 = vrot.slane %v357, 5
      %v1432 = vsel %vm1341, %v1430, %v1431
      %v1433 = vrot.slane %v358, 5
      %v1434 = vrot.slane %v1433, 4
      %v1435 = vrot.slane %v359, 5
      %v1436 = vsel %vm1341, %v1434, %v1435
      %v1437 = vrot.slane %v1435, 4
      %v1438 = vrot.slane %v360, 5
      %v1439 = vsel %vm1341, %v1437, %v1438
      %v1440 = vrot.slane %v361, 5
      %v1441 = vrot.slane %v1440, 4
      %v1442 = vrot.slane %v362, 5
      %v1443 = vsel %vm1341, %v1441, %v1442
      %v1444 = vrot.slane %v1442, 4
      %v1445 = vrot.slane %v363, 5
      %v1446 = vsel %vm1341, %v1444, %v1445
      %v1447 = vrot.slane %v364, 5
      %v1448 = vrot.slane %v1447, 4
      %v1449 = vrot.slane %v365, 5
      %v1450 = vsel %vm1341, %v1448, %v1449
      %v1451 = vrot.slane %v1449, 4
      %v1452 = vrot.slane %v366, 5
      %v1453 = vsel %vm1341, %v1451, %v1452
      %v1454 = vunpack.c.l.b16 %v1345
      %v1455 = vunpack.c.l.b16 %v1348
      %v1456 = vunpack.c.l.b16 %v1352
      %v1457 = vunpack.c.l.b16 %v1355
      %v1458 = vunpack.c.l.b16 %v1359
      %v1459 = vunpack.c.l.b16 %v1362
      %v1460 = vunpack.c.l.b16 %v1366
      %v1461 = vunpack.c.l.b16 %v1369
      %v1462 = vunpack.c.l.b16 %v1373
      %v1463 = vunpack.c.l.b16 %v1376
      %v1464 = vunpack.c.l.b16 %v1380
      %v1465 = vunpack.c.l.b16 %v1383
      %v1466 = vunpack.c.l.b16 %v1387
      %v1467 = vunpack.c.l.b16 %v1390
      %v1468 = vunpack.c.l.b16 %v1394
      %v1469 = vunpack.c.l.b16 %v1397
      %v1470 = vunpack.c.l.b16 %v1401
      %v1471 = vunpack.c.l.b16 %v1404
      %v1472 = vunpack.c.l.b16 %v1408
      %v1473 = vunpack.c.l.b16 %v1411
      %v1474 = vunpack.c.l.b16 %v1415
      %v1475 = vunpack.c.l.b16 %v1418
      %v1476 = vunpack.c.l.b16 %v1422
      %v1477 = vunpack.c.l.b16 %v1425
      %v1478 = vunpack.c.l.b16 %v1429
      %v1479 = vunpack.c.l.b16 %v1432
      %v1480 = vunpack.c.l.b16 %v1436
      %v1481 = vunpack.c.l.b16 %v1439
      %v1482 = vunpack.c.l.b16 %v1443
      %v1483 = vunpack.c.l.b16 %v1446
      %v1484 = vunpack.c.l.b16 %v1450
      %v1485 = vunpack.c.l.b16 %v1453
      %v1486 = vpack.c.b16 %v1455, %v1454
      %v1487 = vpack.c.b16 %v1457, %v1456
      %v1488 = vpack.c.b16 %v1459, %v1458
      %v1489 = vpack.c.b16 %v1461, %v1460
      %v1490 = vpack.c.b16 %v1463, %v1462
      %v1491 = vpack.c.b16 %v1465, %v1464
      %v1492 = vpack.c.b16 %v1467, %v1466
      %v1493 = vpack.c.b16 %v1469, %v1468
      %v1494 = vpack.c.b16 %v1471, %v1470
      %v1495 = vpack.c.b16 %v1473, %v1472
      %v1496 = vpack.c.b16 %v1475, %v1474
      %v1497 = vpack.c.b16 %v1477, %v1476
      %v1498 = vpack.c.b16 %v1479, %v1478
      %v1499 = vpack.c.b16 %v1481, %v1480
      %v1500 = vpack.c.b16 %v1483, %v1482
      %v1501 = vpack.c.b16 %v1485, %v1484
      %v1503 = vsel %vm817, %v1486, 0
      %v1506 = vsel %vm817, %v1487, 0
      %v1509 = vsel %vm817, %v1488, 0
      %v1512 = vsel %vm817, %v1489, 0
      %v1515 = vsel %vm817, %v1490, 0
      %v1518 = vsel %vm817, %v1491, 0
      %v1521 = vsel %vm817, %v1492, 0
      %v1524 = vsel %vm817, %v1493, 0
      %v1527 = vsel %vm817, %v1494, 0
      %v1530 = vsel %vm817, %v1495, 0
      %v1533 = vsel %vm817, %v1496, 0
      %v1536 = vsel %vm817, %v1497, 0
      %v1539 = vsel %vm817, %v1498, 0
      %v1542 = vsel %vm817, %v1499, 0
      %v1545 = vsel %vm817, %v1500, 0
      %v1548 = vsel %vm817, %v1501, 0
      %v1551 = vsel %vm866, %v374, 0
      %1553 = vmatprep.subr.bf16.mxu0 0
      %1554 = vmatpush1.bf16.msra.mxu0 %v1551
      %1555 = vmatprep.subr.bf16.mxu0 0
      %1556 = vmatpush1.bf16.msra.mxu0 0
      %1557 = vmatprep.subr.bf16.mxu0 0
      %1558 = vmatpush1.bf16.msra.mxu0 0
      %1559 = vmatprep.subr.bf16.mxu0 0
      %1560 = vmatpush1.bf16.msra.mxu0 0
      %1561 = vmatprep.subr.bf16.mxu0 0
      %1562 = vmatpush1.bf16.msra.mxu0 0
      %1563 = vmatprep.subr.bf16.mxu0 0
      %1564 = vmatpush1.bf16.msra.mxu0 0
      %1565 = vmatprep.subr.bf16.mxu0 0
      %1566 = vmatpush1.bf16.msra.mxu0 0
      %1567 = vmatprep.subr.bf16.mxu0 0
      %1568 = vmatpush1.bf16.msra.mxu0 0
      %1569 = vmatprep.subr.bf16.mxu0 0
      %1570 = vmatpush1.bf16.msra.mxu0 0
      %1571 = vmatprep.subr.bf16.mxu0 0
      %1572 = vmatpush1.bf16.msra.mxu0 0
      %1573 = vmatprep.subr.bf16.mxu0 0
      %1574 = vmatpush1.bf16.msra.mxu0 0
      %1575 = vmatprep.subr.bf16.mxu0 0
      %1576 = vmatpush1.bf16.msra.mxu0 0
      %1577 = vmatprep.subr.bf16.mxu0 0
      %1578 = vmatpush1.bf16.msra.mxu0 0
      %1579 = vmatprep.subr.bf16.mxu0 0
      %1580 = vmatpush1.bf16.msra.mxu0 0
      %1581 = vmatprep.subr.bf16.mxu0 0
      %1582 = vmatpush1.bf16.msra.mxu0 0
      %1583 = vmatprep.subr.bf16.mxu0 0
      %1584 = vmatpush1.bf16.msra.mxu0 0
      %1585 = vmatprep.mubr.bf16.mxu0 0
      %1586 = vmatmul.mubr.bf16.gmra.mrb[0].mxu0 %v1503
      %v1587 = vpop.f32.mrb[0].mxu0
      %v1588 = vadd.f32 0.0, %v1587
      %v1589 = vpop.f32.mrb[0].mxu0
      %v1590 = vpop.f32.mrb[0].mxu0
      %v1591 = vadd.f32 0.0, %v1590
      %v1592 = vpop.f32.mrb[0].mxu0
      %1593 = vmatprep.mubr.bf16.mxu0 0
      %1594 = vmatmul.mubr.bf16.gmra.mrb[0].mxu0 %v1506
      %v1595 = vpop.f32.mrb[0].mxu0
      %v1596 = vadd.f32 0.0, %v1595
      %v1597 = vpop.f32.mrb[0].mxu0
      %v1598 = vpop.f32.mrb[0].mxu0
      %v1599 = vadd.f32 0.0, %v1598
      %v1600 = vpop.f32.mrb[0].mxu0
      %1601 = vmatprep.mubr.bf16.mxu0 0
      %1602 = vmatmul.mubr.bf16.gmra.mrb[0].mxu0 %v1509
      %v1603 = vpop.f32.mrb[0].mxu0
      %v1604 = vadd.f32 0.0, %v1603
      %v1605 = vpop.f32.mrb[0].mxu0
      %v1606 = vpop.f32.mrb[0].mxu0
      %v1607 = vadd.f32 0.0, %v1606
      %v1608 = vpop.f32.mrb[0].mxu0
      %1609 = vmatprep.mubr.bf16.mxu0 0
      %1610 = vmatmul.mubr.bf16.gmra.mrb[0].mxu0 %v1512
      %v1611 = vpop.f32.mrb[0].mxu0
      %v1612 = vadd.f32 0.0, %v1611
      %v1613 = vpop.f32.mrb[0].mxu0
      %v1614 = vpop.f32.mrb[0].mxu0
      %v1615 = vadd.f32 0.0, %v1614
      %v1616 = vpop.f32.mrb[0].mxu0
      %1617 = vmatprep.mubr.bf16.mxu0 0
      %1618 = vmatmul.mubr.bf16.gmra.mrb[0].mxu0 %v1515
      %v1619 = vpop.f32.mrb[0].mxu0
      %v1620 = vadd.f32 0.0, %v1619
      %v1621 = vpop.f32.mrb[0].mxu0
      %v1622 = vpop.f32.mrb[0].mxu0
      %v1623 = vadd.f32 0.0, %v1622
      %v1624 = vpop.f32.mrb[0].mxu0
      %1625 = vmatprep.mubr.bf16.mxu0 0
      %1626 = vmatmul.mubr.bf16.gmra.mrb[0].mxu0 %v1518
      %v1627 = vpop.f32.mrb[0].mxu0
      %v1628 = vadd.f32 0.0, %v1627
      %v1629 = vpop.f32.mrb[0].mxu0
      %v1630 = vpop.f32.mrb[0].mxu0
      %v1631 = vadd.f32 0.0, %v1630
      %v1632 = vpop.f32.mrb[0].mxu0
      %1633 = vmatprep.mubr.bf16.mxu0 0
      %1634 = vmatmul.mubr.bf16.gmra.mrb[0].mxu0 %v1521
      %v1635 = vpop.f32.mrb[0].mxu0
      %v1636 = vadd.f32 0.0, %v1635
      %v1637 = vpop.f32.mrb[0].mxu0
      %v1638 = vpop.f32.mrb[0].mxu0
      %v1639 = vadd.f32 0.0, %v1638
      %v1640 = vpop.f32.mrb[0].mxu0
      %1641 = vmatprep.mubr.bf16.mxu0 0
      %1642 = vmatmul.mubr.bf16.gmra.mrb[0].mxu0 %v1524
      %v1643 = vpop.f32.mrb[0].mxu0
      %v1644 = vadd.f32 0.0, %v1643
      %v1645 = vpop.f32.mrb[0].mxu0
      %v1646 = vpop.f32.mrb[0].mxu0
      %v1647 = vadd.f32 0.0, %v1646
      %v1648 = vpop.f32.mrb[0].mxu0
      %1649 = vmatprep.mubr.bf16.mxu0 0
      %1650 = vmatmul.mubr.bf16.gmra.mrb[0].mxu0 %v1527
      %v1651 = vpop.f32.mrb[0].mxu0
      %v1652 = vadd.f32 0.0, %v1651
      %v1653 = vpop.f32.mrb[0].mxu0
      %v1654 = vpop.f32.mrb[0].mxu0
      %v1655 = vadd.f32 0.0, %v1654
      %v1656 = vpop.f32.mrb[0].mxu0
      %1657 = vmatprep.mubr.bf16.mxu0 0
      %1658 = vmatmul.mubr.bf16.gmra.mrb[0].mxu0 %v1530
      %v1659 = vpop.f32.mrb[0].mxu0
      %v1660 = vadd.f32 0.0, %v1659
      %v1661 = vpop.f32.mrb[0].mxu0
      %v1662 = vpop.f32.mrb[0].mxu0
      %v1663 = vadd.f32 0.0, %v1662
      %v1664 = vpop.f32.mrb[0].mxu0
      %1665 = vmatprep.mubr.bf16.mxu0 0
      %1666 = vmatmul.mubr.bf16.gmra.mrb[0].mxu0 %v1533
      %v1667 = vpop.f32.mrb[0].mxu0
      %v1668 = vadd.f32 0.0, %v1667
      %v1669 = vpop.f32.mrb[0].mxu0
      %v1670 = vpop.f32.mrb[0].mxu0
      %v1671 = vadd.f32 0.0, %v1670
      %v1672 = vpop.f32.mrb[0].mxu0
      %1673 = vmatprep.mubr.bf16.mxu0 0
      %1674 = vmatmul.mubr.bf16.gmra.mrb[0].mxu0 %v1536
      %v1675 = vpop.f32.mrb[0].mxu0
      %v1676 = vadd.f32 0.0, %v1675
      %v1677 = vpop.f32.mrb[0].mxu0
      %v1678 = vpop.f32.mrb[0].mxu0
      %v1679 = vadd.f32 0.0, %v1678
      %v1680 = vpop.f32.mrb[0].mxu0
      %1681 = vmatprep.mubr.bf16.mxu0 0
      %1682 = vmatmul.mubr.bf16.gmra.mrb[0].mxu0 %v1539
      %v1683 = vpop.f32.mrb[0].mxu0
      %v1684 = vadd.f32 0.0, %v1683
      %v1685 = vpop.f32.mrb[0].mxu0
      %v1686 = vpop.f32.mrb[0].mxu0
      %v1687 = vadd.f32 0.0, %v1686
      %v1688 = vpop.f32.mrb[0].mxu0
      %1689 = vmatprep.mubr.bf16.mxu0 0
      %1690 = vmatmul.mubr.bf16.gmra.mrb[0].mxu0 %v1542
      %v1691 = vpop.f32.mrb[0].mxu0
      %v1692 = vadd.f32 0.0, %v1691
      %v1693 = vpop.f32.mrb[0].mxu0
      %v1694 = vpop.f32.mrb[0].mxu0
      %v1695 = vadd.f32 0.0, %v1694
      %v1696 = vpop.f32.mrb[0].mxu0
      %1697 = vmatprep.mubr.bf16.mxu0 0
      %1698 = vmatmul.mubr.bf16.gmra.mrb[0].mxu0 %v1545
      %v1699 = vpop.f32.mrb[0].mxu0
      %v1700 = vadd.f32 0.0, %v1699
      %v1701 = vpop.f32.mrb[0].mxu0
      %v1702 = vpop.f32.mrb[0].mxu0
      %v1703 = vadd.f32 0.0, %v1702
      %v1704 = vpop.f32.mrb[0].mxu0
      %1705 = vmatprep.mubr.bf16.mxu0 0
      %1706 = vmatmul.mubr.bf16.gmra.mrb[0].mxu0 %v1548
      %v1707 = vpop.f32.mrb[0].mxu0
      %v1708 = vadd.f32 0.0, %v1707
      %v1709 = vpop.f32.mrb[0].mxu0
      %v1710 = vpop.f32.mrb[0].mxu0
      %v1711 = vadd.f32 0.0, %v1710
      %v1712 = vpop.f32.mrb[0].mxu0
      %1713 = vdwg.mxu0
      %v1714 = vadd.f32 %v1197, %v1588
      %v1715 = vadd.f32 %v1200, %v1591
      %v1716 = vadd.f32 %v1205, %v1596
      %v1717 = vadd.f32 %v1208, %v1599
      %v1718 = vadd.f32 %v1213, %v1604
      %v1719 = vadd.f32 %v1216, %v1607
      %v1720 = vadd.f32 %v1221, %v1612
      %v1721 = vadd.f32 %v1224, %v1615
      %v1722 = vadd.f32 %v1229, %v1620
      %v1723 = vadd.f32 %v1232, %v1623
      %v1724 = vadd.f32 %v1237, %v1628
      %v1725 = vadd.f32 %v1240, %v1631
      %v1726 = vadd.f32 %v1245, %v1636
      %v1727 = vadd.f32 %v1248, %v1639
      %v1728 = vadd.f32 %v1253, %v1644
      %v1729 = vadd.f32 %v1256, %v1647
      %v1730 = vadd.f32 %v1261, %v1652
      %v1731 = vadd.f32 %v1264, %v1655
      %v1732 = vadd.f32 %v1269, %v1660
      %v1733 = vadd.f32 %v1272, %v1663
      %v1734 = vadd.f32 %v1277, %v1668
      %v1735 = vadd.f32 %v1280, %v1671
      %v1736 = vadd.f32 %v1285, %v1676
      %v1737 = vadd.f32 %v1288, %v1679
      %v1738 = vadd.f32 %v1293, %v1684
      %v1739 = vadd.f32 %v1296, %v1687
      %v1740 = vadd.f32 %v1301, %v1692
      %v1741 = vadd.f32 %v1304, %v1695
      %v1742 = vadd.f32 %v1309, %v1700
      %v1743 = vadd.f32 %v1312, %v1703
      %v1744 = vadd.f32 %v1317, %v1708
      %v1745 = vadd.f32 %v1320, %v1711
      %v1748 = vunpack.c.l.b16 %v367
      %v1749 = vunpack.c.l.b16 %v368
      %v1750 = vpack.c.b16 %v1749, %v1748
      %v1752 = vunpack.c.l.b16 %v374
      %v1753 = vpack.c.b16 %v1752, %v1752
      %v1754 = vrot.slane %v1753, 2
      %v1756 = vsel %vm817, %v1750, 0
      %v1759 = vsel %vm866, %v1754, 0
      %1761 = vmatprep.subr.bf16.mxu0 0
      %1762 = vmatpush1.bf16.msra.mxu0 %v1759
      %1763 = vmatprep.subr.bf16.mxu0 0
      %1764 = vmatpush1.bf16.msra.mxu0 0
      %1765 = vmatprep.subr.bf16.mxu0 0
      %1766 = vmatpush1.bf16.msra.mxu0 0
      %1767 = vmatprep.subr.bf16.mxu0 0
      %1768 = vmatpush1.bf16.msra.mxu0 0
      %1769 = vmatprep.subr.bf16.mxu0 0
      %1770 = vmatpush1.bf16.msra.mxu0 0
      %1771 = vmatprep.subr.bf16.mxu0 0
      %1772 = vmatpush1.bf16.msra.mxu0 0
      %1773 = vmatprep.subr.bf16.mxu0 0
      %1774 = vmatpush1.bf16.msra.mxu0 0
      %1775 = vmatprep.subr.bf16.mxu0 0
      %1776 = vmatpush1.bf16.msra.mxu0 0
      %1777 = vmatprep.subr.bf16.mxu0 0
      %1778 = vmatpush1.bf16.msra.mxu0 0
      %1779 = vmatprep.subr.bf16.mxu0 0
      %1780 = vmatpush1.bf16.msra.mxu0 0
      %1781 = vmatprep.subr.bf16.mxu0 0
      %1782 = vmatpush1.bf16.msra.mxu0 0
      %1783 = vmatprep.subr.bf16.mxu0 0
      %1784 = vmatpush1.bf16.msra.mxu0 0
      %1785 = vmatprep.subr.bf16.mxu0 0
      %1786 = vmatpush1.bf16.msra.mxu0 0
      %1787 = vmatprep.subr.bf16.mxu0 0
      %1788 = vmatpush1.bf16.msra.mxu0 0
      %1789 = vmatprep.subr.bf16.mxu0 0
      %1790 = vmatpush1.bf16.msra.mxu0 0
      %1791 = vmatprep.subr.bf16.mxu0 0
      %1792 = vmatpush1.bf16.msra.mxu0 0
      %1793 = vmatprep.mubr.bf16.mxu0 0
      %1794 = vmatmul.mubr.bf16.gmra.mrb[0].mxu0 %v1115
      %v1795 = vpop.f32.mrb[0].mxu0
      %v1796 = vadd.f32 0.0, %v1795
      %v1797 = vpop.f32.mrb[0].mxu0
      %v1798 = vpop.f32.mrb[0].mxu0
      %v1799 = vadd.f32 0.0, %v1798
      %v1800 = vpop.f32.mrb[0].mxu0
      %1801 = vmatprep.mubr.bf16.mxu0 0
      %1802 = vmatmul.mubr.bf16.gmra.mrb[0].mxu0 %v1118
      %v1803 = vpop.f32.mrb[0].mxu0
      %v1804 = vadd.f32 0.0, %v1803
      %v1805 = vpop.f32.mrb[0].mxu0
      %v1806 = vpop.f32.mrb[0].mxu0
      %v1807 = vadd.f32 0.0, %v1806
      %v1808 = vpop.f32.mrb[0].mxu0
      %1809 = vmatprep.mubr.bf16.mxu0 0
      %1810 = vmatmul.mubr.bf16.gmra.mrb[0].mxu0 %v1121
      %v1811 = vpop.f32.mrb[0].mxu0
      %v1812 = vadd.f32 0.0, %v1811
      %v1813 = vpop.f32.mrb[0].mxu0
      %v1814 = vpop.f32.mrb[0].mxu0
      %v1815 = vadd.f32 0.0, %v1814
      %v1816 = vpop.f32.mrb[0].mxu0
      %1817 = vmatprep.mubr.bf16.mxu0 0
      %1818 = vmatmul.mubr.bf16.gmra.mrb[0].mxu0 %v1124
      %v1819 = vpop.f32.mrb[0].mxu0
      %v1820 = vadd.f32 0.0, %v1819
      %v1821 = vpop.f32.mrb[0].mxu0
      %v1822 = vpop.f32.mrb[0].mxu0
      %v1823 = vadd.f32 0.0, %v1822
      %v1824 = vpop.f32.mrb[0].mxu0
      %1825 = vmatprep.mubr.bf16.mxu0 0
      %1826 = vmatmul.mubr.bf16.gmra.mrb[0].mxu0 %v1127
      %v1827 = vpop.f32.mrb[0].mxu0
      %v1828 = vadd.f32 0.0, %v1827
      %v1829 = vpop.f32.mrb[0].mxu0
      %v1830 = vpop.f32.mrb[0].mxu0
      %v1831 = vadd.f32 0.0, %v1830
      %v1832 = vpop.f32.mrb[0].mxu0
      %1833 = vmatprep.mubr.bf16.mxu0 0
      %1834 = vmatmul.mubr.bf16.gmra.mrb[0].mxu0 %v1130
      %v1835 = vpop.f32.mrb[0].mxu0
      %v1836 = vadd.f32 0.0, %v1835
      %v1837 = vpop.f32.mrb[0].mxu0
      %v1838 = vpop.f32.mrb[0].mxu0
      %v1839 = vadd.f32 0.0, %v1838
      %v1840 = vpop.f32.mrb[0].mxu0
      %1841 = vmatprep.mubr.bf16.mxu0 0
      %1842 = vmatmul.mubr.bf16.gmra.mrb[0].mxu0 %v1133
      %v1843 = vpop.f32.mrb[0].mxu0
      %v1844 = vadd.f32 0.0, %v1843
      %v1845 = vpop.f32.mrb[0].mxu0
      %v1846 = vpop.f32.mrb[0].mxu0
      %v1847 = vadd.f32 0.0, %v1846
      %v1848 = vpop.f32.mrb[0].mxu0
      %1849 = vmatprep.mubr.bf16.mxu0 0
      %1850 = vmatmul.mubr.bf16.gmra.mrb[0].mxu0 %v1136
      %v1851 = vpop.f32.mrb[0].mxu0
      %v1852 = vadd.f32 0.0, %v1851
      %v1853 = vpop.f32.mrb[0].mxu0
      %v1854 = vpop.f32.mrb[0].mxu0
      %v1855 = vadd.f32 0.0, %v1854
      %v1856 = vpop.f32.mrb[0].mxu0
      %1857 = vmatprep.mubr.bf16.mxu0 0
      %1858 = vmatmul.mubr.bf16.gmra.mrb[0].mxu0 %v1139
      %v1859 = vpop.f32.mrb[0].mxu0
      %v1860 = vadd.f32 0.0, %v1859
      %v1861 = vpop.f32.mrb[0].mxu0
      %v1862 = vpop.f32.mrb[0].mxu0
      %v1863 = vadd.f32 0.0, %v1862
      %v1864 = vpop.f32.mrb[0].mxu0
      %1865 = vmatprep.mubr.bf16.mxu0 0
      %1866 = vmatmul.mubr.bf16.gmra.mrb[0].mxu0 %v1142
      %v1867 = vpop.f32.mrb[0].mxu0
      %v1868 = vadd.f32 0.0, %v1867
      %v1869 = vpop.f32.mrb[0].mxu0
      %v1870 = vpop.f32.mrb[0].mxu0
      %v1871 = vadd.f32 0.0, %v1870
      %v1872 = vpop.f32.mrb[0].mxu0
      %1873 = vmatprep.mubr.bf16.mxu0 0
      %1874 = vmatmul.mubr.bf16.gmra.mrb[0].mxu0 %v1145
      %v1875 = vpop.f32.mrb[0].mxu0
      %v1876 = vadd.f32 0.0, %v1875
      %v1877 = vpop.f32.mrb[0].mxu0
      %v1878 = vpop.f32.mrb[0].mxu0
      %v1879 = vadd.f32 0.0, %v1878
      %v1880 = vpop.f32.mrb[0].mxu0
      %1881 = vmatprep.mubr.bf16.mxu0 0
      %1882 = vmatmul.mubr.bf16.gmra.mrb[0].mxu0 %v1148
      %v1883 = vpop.f32.mrb[0].mxu0
      %v1884 = vadd.f32 0.0, %v1883
      %v1885 = vpop.f32.mrb[0].mxu0
      %v1886 = vpop.f32.mrb[0].mxu0
      %v1887 = vadd.f32 0.0, %v1886
      %v1888 = vpop.f32.mrb[0].mxu0
      %1889 = vmatprep.mubr.bf16.mxu0 0
      %1890 = vmatmul.mubr.bf16.gmra.mrb[0].mxu0 %v1151
      %v1891 = vpop.f32.mrb[0].mxu0
      %v1892 = vadd.f32 0.0, %v1891
      %v1893 = vpop.f32.mrb[0].mxu0
      %v1894 = vpop.f32.mrb[0].mxu0
      %v1895 = vadd.f32 0.0, %v1894
      %v1896 = vpop.f32.mrb[0].mxu0
      %1897 = vmatprep.mubr.bf16.mxu0 0
      %1898 = vmatmul.mubr.bf16.gmra.mrb[0].mxu0 %v1154
      %v1899 = vpop.f32.mrb[0].mxu0
      %v1900 = vadd.f32 0.0, %v1899
      %v1901 = vpop.f32.mrb[0].mxu0
      %v1902 = vpop.f32.mrb[0].mxu0
      %v1903 = vadd.f32 0.0, %v1902
      %v1904 = vpop.f32.mrb[0].mxu0
      %1905 = vmatprep.mubr.bf16.mxu0 0
      %1906 = vmatmul.mubr.bf16.gmra.mrb[0].mxu0 %v1157
      %v1907 = vpop.f32.mrb[0].mxu0
      %v1908 = vadd.f32 0.0, %v1907
      %v1909 = vpop.f32.mrb[0].mxu0
      %v1910 = vpop.f32.mrb[0].mxu0
      %v1911 = vadd.f32 0.0, %v1910
      %v1912 = vpop.f32.mrb[0].mxu0
      %1913 = vmatprep.mubr.bf16.mxu0 0
      %1914 = vmatmul.mubr.bf16.gmra.mrb[0].mxu0 %v1756
      %v1915 = vpop.f32.mrb[0].mxu0
      %v1916 = vadd.f32 0.0, %v1915
      %v1917 = vpop.f32.mrb[0].mxu0
      %v1918 = vpop.f32.mrb[0].mxu0
      %v1919 = vadd.f32 0.0, %v1918
      %v1920 = vpop.f32.mrb[0].mxu0
      %1921 = vdwg.mxu0
      %v1922 = vadd.f32 %v1714, %v1796
      %v1923 = vadd.f32 %v1715, %v1799
      %v1924 = vadd.f32 %v1716, %v1804
      %v1925 = vadd.f32 %v1717, %v1807
      %v1926 = vadd.f32 %v1718, %v1812
      %v1927 = vadd.f32 %v1719, %v1815
      %v1928 = vadd.f32 %v1720, %v1820
      %v1929 = vadd.f32 %v1721, %v1823
      %v1930 = vadd.f32 %v1722, %v1828
      %v1931 = vadd.f32 %v1723, %v1831
      %v1932 = vadd.f32 %v1724, %v1836
      %v1933 = vadd.f32 %v1725, %v1839
      %v1934 = vadd.f32 %v1726, %v1844
      %v1935 = vadd.f32 %v1727, %v1847
      %v1936 = vadd.f32 %v1728, %v1852
      %v1937 = vadd.f32 %v1729, %v1855
      %v1938 = vadd.f32 %v1730, %v1860
      %v1939 = vadd.f32 %v1731, %v1863
      %v1940 = vadd.f32 %v1732, %v1868
      %v1941 = vadd.f32 %v1733, %v1871
      %v1942 = vadd.f32 %v1734, %v1876
      %v1943 = vadd.f32 %v1735, %v1879
      %v1944 = vadd.f32 %v1736, %v1884
      %v1945 = vadd.f32 %v1737, %v1887
      %v1946 = vadd.f32 %v1738, %v1892
      %v1947 = vadd.f32 %v1739, %v1895
      %v1948 = vadd.f32 %v1740, %v1900
      %v1949 = vadd.f32 %v1741, %v1903
      %v1950 = vadd.f32 %v1742, %v1908
      %v1951 = vadd.f32 %v1743, %v1911
      %v1952 = vadd.f32 %v1744, %v1916
      %v1953 = vadd.f32 %v1745, %v1919
      %v1955 = vshrl.u32 %v367, 16
      %v1957 = vrot.slane %v1955, 4
      %v1958 = vshll.u32 %v367, 16
      %v1960 = vrot.slane %v1958, 5
      %v1961 = vor.u32 %v1957, %v1960
      %v1962 = vrot.slane %v1961, 4
      %v1964 = vshll.u32 %v368, 16
      %v1966 = vrot.slane %v1964, 5
      %v1967 = vsel %vm380, %v1962, %v1966
      %v1968 = vshrl.u32 %v368, 16
      %v1970 = vrot.slane %v1968, 4
      %v1971 = vor.u32 %v1970, %v1966
      %v1972 = vrot.slane %v1971, 4
      %v1974 = vshll.u32 %v369, 16
      %v1976 = vrot.slane %v1974, 5
      %v1977 = vsel %vm380, %v1972, %v1976
      %v1978 = vunpack.c.l.b16 %v1967
      %v1979 = vunpack.c.l.b16 %v1977
      %v1980 = vpack.c.b16 %v1979, %v1978
      %v1982 = vsel %vm817, %v1980, 0
      %v1985 = vsel %vm866, %v375, 0
      %1987 = vmatprep.subr.bf16.mxu0 0
      %1988 = vmatpush1.bf16.msra.mxu0 %v1985
      %1989 = vmatprep.subr.bf16.mxu0 0
      %1990 = vmatpush1.bf16.msra.mxu0 0
      %1991 = vmatprep.subr.bf16.mxu0 0
      %1992 = vmatpush1.bf16.msra.mxu0 0
      %1993 = vmatprep.subr.bf16.mxu0 0
      %1994 = vmatpush1.bf16.msra.mxu0 0
      %1995 = vmatprep.subr.bf16.mxu0 0
      %1996 = vmatpush1.bf16.msra.mxu0 0
      %1997 = vmatprep.subr.bf16.mxu0 0
      %1998 = vmatpush1.bf16.msra.mxu0 0
      %1999 = vmatprep.subr.bf16.mxu0 0
      %2000 = vmatpush1.bf16.msra.mxu0 0
      %2001 = vmatprep.subr.bf16.mxu0 0
      %2002 = vmatpush1.bf16.msra.mxu0 0
      %2003 = vmatprep.subr.bf16.mxu0 0
      %2004 = vmatpush1.bf16.msra.mxu0 0
      %2005 = vmatprep.subr.bf16.mxu0 0
      %2006 = vmatpush1.bf16.msra.mxu0 0
      %2007 = vmatprep.subr.bf16.mxu0 0
      %2008 = vmatpush1.bf16.msra.mxu0 0
      %2009 = vmatprep.subr.bf16.mxu0 0
      %2010 = vmatpush1.bf16.msra.mxu0 0
      %2011 = vmatprep.subr.bf16.mxu0 0
      %2012 = vmatpush1.bf16.msra.mxu0 0
      %2013 = vmatprep.subr.bf16.mxu0 0
      %2014 = vmatpush1.bf16.msra.mxu0 0
      %2015 = vmatprep.subr.bf16.mxu0 0
      %2016 = vmatpush1.bf16.msra.mxu0 0
      %2017 = vmatprep.subr.bf16.mxu0 0
      %2018 = vmatpush1.bf16.msra.mxu0 0
      %2019 = vmatprep.mubr.bf16.mxu0 0
      %2020 = vmatmul.mubr.bf16.gmra.mrb[0].mxu0 %v822
      %v2021 = vpop.f32.mrb[0].mxu0
      %v2022 = vadd.f32 0.0, %v2021
      %v2023 = vpop.f32.mrb[0].mxu0
      %v2024 = vpop.f32.mrb[0].mxu0
      %v2025 = vadd.f32 0.0, %v2024
      %v2026 = vpop.f32.mrb[0].mxu0
      %2027 = vmatprep.mubr.bf16.mxu0 0
      %2028 = vmatmul.mubr.bf16.gmra.mrb[0].mxu0 %v825
      %v2029 = vpop.f32.mrb[0].mxu0
      %v2030 = vadd.f32 0.0, %v2029
      %v2031 = vpop.f32.mrb[0].mxu0
      %v2032 = vpop.f32.mrb[0].mxu0
      %v2033 = vadd.f32 0.0, %v2032
      %v2034 = vpop.f32.mrb[0].mxu0
      %2035 = vmatprep.mubr.bf16.mxu0 0
      %2036 = vmatmul.mubr.bf16.gmra.mrb[0].mxu0 %v828
      %v2037 = vpop.f32.mrb[0].mxu0
      %v2038 = vadd.f32 0.0, %v2037
      %v2039 = vpop.f32.mrb[0].mxu0
      %v2040 = vpop.f32.mrb[0].mxu0
      %v2041 = vadd.f32 0.0, %v2040
      %v2042 = vpop.f32.mrb[0].mxu0
      %2043 = vmatprep.mubr.bf16.mxu0 0
      %2044 = vmatmul.mubr.bf16.gmra.mrb[0].mxu0 %v831
      %v2045 = vpop.f32.mrb[0].mxu0
      %v2046 = vadd.f32 0.0, %v2045
      %v2047 = vpop.f32.mrb[0].mxu0
      %v2048 = vpop.f32.mrb[0].mxu0
      %v2049 = vadd.f32 0.0, %v2048
      %v2050 = vpop.f32.mrb[0].mxu0
      %2051 = vmatprep.mubr.bf16.mxu0 0
      %2052 = vmatmul.mubr.bf16.gmra.mrb[0].mxu0 %v834
      %v2053 = vpop.f32.mrb[0].mxu0
      %v2054 = vadd.f32 0.0, %v2053
      %v2055 = vpop.f32.mrb[0].mxu0
      %v2056 = vpop.f32.mrb[0].mxu0
      %v2057 = vadd.f32 0.0, %v2056
      %v2058 = vpop.f32.mrb[0].mxu0
      %2059 = vmatprep.mubr.bf16.mxu0 0
      %2060 = vmatmul.mubr.bf16.gmra.mrb[0].mxu0 %v837
      %v2061 = vpop.f32.mrb[0].mxu0
      %v2062 = vadd.f32 0.0, %v2061
      %v2063 = vpop.f32.mrb[0].mxu0
      %v2064 = vpop.f32.mrb[0].mxu0
      %v2065 = vadd.f32 0.0, %v2064
      %v2066 = vpop.f32.mrb[0].mxu0
      %2067 = vmatprep.mubr.bf16.mxu0 0
      %2068 = vmatmul.mubr.bf16.gmra.mrb[0].mxu0 %v840
      %v2069 = vpop.f32.mrb[0].mxu0
      %v2070 = vadd.f32 0.0, %v2069
      %v2071 = vpop.f32.mrb[0].mxu0
      %v2072 = vpop.f32.mrb[0].mxu0
      %v2073 = vadd.f32 0.0, %v2072
      %v2074 = vpop.f32.mrb[0].mxu0
      %2075 = vmatprep.mubr.bf16.mxu0 0
      %2076 = vmatmul.mubr.bf16.gmra.mrb[0].mxu0 %v843
      %v2077 = vpop.f32.mrb[0].mxu0
      %v2078 = vadd.f32 0.0, %v2077
      %v2079 = vpop.f32.mrb[0].mxu0
      %v2080 = vpop.f32.mrb[0].mxu0
      %v2081 = vadd.f32 0.0, %v2080
      %v2082 = vpop.f32.mrb[0].mxu0
      %2083 = vmatprep.mubr.bf16.mxu0 0
      %2084 = vmatmul.mubr.bf16.gmra.mrb[0].mxu0 %v846
      %v2085 = vpop.f32.mrb[0].mxu0
      %v2086 = vadd.f32 0.0, %v2085
      %v2087 = vpop.f32.mrb[0].mxu0
      %v2088 = vpop.f32.mrb[0].mxu0
      %v2089 = vadd.f32 0.0, %v2088
      %v2090 = vpop.f32.mrb[0].mxu0
      %2091 = vmatprep.mubr.bf16.mxu0 0
      %2092 = vmatmul.mubr.bf16.gmra.mrb[0].mxu0 %v849
      %v2093 = vpop.f32.mrb[0].mxu0
      %v2094 = vadd.f32 0.0, %v2093
      %v2095 = vpop.f32.mrb[0].mxu0
      %v2096 = vpop.f32.mrb[0].mxu0
      %v2097 = vadd.f32 0.0, %v2096
      %v2098 = vpop.f32.mrb[0].mxu0
      %2099 = vmatprep.mubr.bf16.mxu0 0
      %2100 = vmatmul.mubr.bf16.gmra.mrb[0].mxu0 %v852
      %v2101 = vpop.f32.mrb[0].mxu0
      %v2102 = vadd.f32 0.0, %v2101
      %v2103 = vpop.f32.mrb[0].mxu0
      %v2104 = vpop.f32.mrb[0].mxu0
      %v2105 = vadd.f32 0.0, %v2104
      %v2106 = vpop.f32.mrb[0].mxu0
      %2107 = vmatprep.mubr.bf16.mxu0 0
      %2108 = vmatmul.mubr.bf16.gmra.mrb[0].mxu0 %v855
      %v2109 = vpop.f32.mrb[0].mxu0
      %v2110 = vadd.f32 0.0, %v2109
      %v2111 = vpop.f32.mrb[0].mxu0
      %v2112 = vpop.f32.mrb[0].mxu0
      %v2113 = vadd.f32 0.0, %v2112
      %v2114 = vpop.f32.mrb[0].mxu0
      %2115 = vmatprep.mubr.bf16.mxu0 0
      %2116 = vmatmul.mubr.bf16.gmra.mrb[0].mxu0 %v858
      %v2117 = vpop.f32.mrb[0].mxu0
      %v2118 = vadd.f32 0.0, %v2117
      %v2119 = vpop.f32.mrb[0].mxu0
      %v2120 = vpop.f32.mrb[0].mxu0
      %v2121 = vadd.f32 0.0, %v2120
      %v2122 = vpop.f32.mrb[0].mxu0
      %2123 = vmatprep.mubr.bf16.mxu0 0
      %2124 = vmatmul.mubr.bf16.gmra.mrb[0].mxu0 %v861
      %v2125 = vpop.f32.mrb[0].mxu0
      %v2126 = vadd.f32 0.0, %v2125
      %v2127 = vpop.f32.mrb[0].mxu0
      %v2128 = vpop.f32.mrb[0].mxu0
      %v2129 = vadd.f32 0.0, %v2128
      %v2130 = vpop.f32.mrb[0].mxu0
      %2131 = vmatprep.mubr.bf16.mxu0 0
      %2132 = vmatmul.mubr.bf16.gmra.mrb[0].mxu0 %v864
      %v2133 = vpop.f32.mrb[0].mxu0
      %v2134 = vadd.f32 0.0, %v2133
      %v2135 = vpop.f32.mrb[0].mxu0
      %v2136 = vpop.f32.mrb[0].mxu0
      %v2137 = vadd.f32 0.0, %v2136
      %v2138 = vpop.f32.mrb[0].mxu0
      %2139 = vmatprep.mubr.bf16.mxu0 0
      %2140 = vmatmul.mubr.bf16.gmra.mrb[0].mxu0 %v1982
      %v2141 = vpop.f32.mrb[0].mxu0
      %v2142 = vadd.f32 0.0, %v2141
      %v2143 = vpop.f32.mrb[0].mxu0
      %v2144 = vpop.f32.mrb[0].mxu0
      %v2145 = vadd.f32 0.0, %v2144
      %v2146 = vpop.f32.mrb[0].mxu0
      %2147 = vdwg.mxu0
      %v2148 = vadd.f32 %v1922, %v2022
      %v2149 = vadd.f32 %v1923, %v2025
      %v2150 = vadd.f32 %v1924, %v2030
      %v2151 = vadd.f32 %v1925, %v2033
      %v2152 = vadd.f32 %v1926, %v2038
      %v2153 = vadd.f32 %v1927, %v2041
      %v2154 = vadd.f32 %v1928, %v2046
      %v2155 = vadd.f32 %v1929, %v2049
      %v2156 = vadd.f32 %v1930, %v2054
      %v2157 = vadd.f32 %v1931, %v2057
      %v2158 = vadd.f32 %v1932, %v2062
      %v2159 = vadd.f32 %v1933, %v2065
      %v2160 = vadd.f32 %v1934, %v2070
      %v2161 = vadd.f32 %v1935, %v2073
      %v2162 = vadd.f32 %v1936, %v2078
      %v2163 = vadd.f32 %v1937, %v2081
      %v2164 = vadd.f32 %v1938, %v2086
      %v2165 = vadd.f32 %v1939, %v2089
      %v2166 = vadd.f32 %v1940, %v2094
      %v2167 = vadd.f32 %v1941, %v2097
      %v2168 = vadd.f32 %v1942, %v2102
      %v2169 = vadd.f32 %v1943, %v2105
      %v2170 = vadd.f32 %v1944, %v2110
      %v2171 = vadd.f32 %v1945, %v2113
      %v2172 = vadd.f32 %v1946, %v2118
      %v2173 = vadd.f32 %v1947, %v2121
      %v2174 = vadd.f32 %v1948, %v2126
      %v2175 = vadd.f32 %v1949, %v2129
      %v2176 = vadd.f32 %v1950, %v2134
      %v2177 = vadd.f32 %v1951, %v2137
      %v2178 = vadd.f32 %v1952, %v2142
      %v2179 = vadd.f32 %v1953, %v2145
      %v2181 = vrot.slane %v367, 5
      %v2182 = vrot.slane %v2181, 4
      %v2183 = vrot.slane %v368, 5
      %v2184 = vsel %vm1341, %v2182, %v2183
      %v2185 = vrot.slane %v2183, 4
      %v2186 = vrot.slane %v369, 5
      %v2187 = vsel %vm1341, %v2185, %v2186
      %v2188 = vunpack.c.l.b16 %v2184
      %v2189 = vunpack.c.l.b16 %v2187
      %v2190 = vpack.c.b16 %v2189, %v2188
      %v2192 = vunpack.c.l.b16 %v375
      %v2193 = vpack.c.b16 %v2192, %v2192
      %v2194 = vrot.slane %v2193, 2
      %v2196 = vsel %vm817, %v2190, 0
      %v2199 = vsel %vm866, %v2194, 0
      %2201 = vmatprep.subr.bf16.mxu0 0
      %2202 = vmatpush1.bf16.msra.mxu0 %v2199
      %2203 = vmatprep.subr.bf16.mxu0 0
      %2204 = vmatpush1.bf16.msra.mxu0 0
      %2205 = vmatprep.subr.bf16.mxu0 0
      %2206 = vmatpush1.bf16.msra.mxu0 0
      %2207 = vmatprep.subr.bf16.mxu0 0
      %2208 = vmatpush1.bf16.msra.mxu0 0
      %2209 = vmatprep.subr.bf16.mxu0 0
      %2210 = vmatpush1.bf16.msra.mxu0 0
      %2211 = vmatprep.subr.bf16.mxu0 0
      %2212 = vmatpush1.bf16.msra.mxu0 0
      %2213 = vmatprep.subr.bf16.mxu0 0
      %2214 = vmatpush1.bf16.msra.mxu0 0
      %2215 = vmatprep.subr.bf16.mxu0 0
      %2216 = vmatpush1.bf16.msra.mxu0 0
      %2217 = vmatprep.subr.bf16.mxu0 0
      %2218 = vmatpush1.bf16.msra.mxu0 0
      %2219 = vmatprep.subr.bf16.mxu0 0
      %2220 = vmatpush1.bf16.msra.mxu0 0
      %2221 = vmatprep.subr.bf16.mxu0 0
      %2222 = vmatpush1.bf16.msra.mxu0 0
      %2223 = vmatprep.subr.bf16.mxu0 0
      %2224 = vmatpush1.bf16.msra.mxu0 0
      %2225 = vmatprep.subr.bf16.mxu0 0
      %2226 = vmatpush1.bf16.msra.mxu0 0
      %2227 = vmatprep.subr.bf16.mxu0 0
      %2228 = vmatpush1.bf16.msra.mxu0 0
      %2229 = vmatprep.subr.bf16.mxu0 0
      %2230 = vmatpush1.bf16.msra.mxu0 0
      %2231 = vmatprep.subr.bf16.mxu0 0
      %2232 = vmatpush1.bf16.msra.mxu0 0
      %2233 = vmatprep.mubr.bf16.mxu0 0
      %2234 = vmatmul.mubr.bf16.gmra.mrb[0].mxu0 %v1506
      %v2235 = vpop.f32.mrb[0].mxu0
      %v2236 = vadd.f32 0.0, %v2235
      %v2237 = vpop.f32.mrb[0].mxu0
      %v2238 = vpop.f32.mrb[0].mxu0
      %v2239 = vadd.f32 0.0, %v2238
      %v2240 = vpop.f32.mrb[0].mxu0
      %2241 = vmatprep.mubr.bf16.mxu0 0
      %2242 = vmatmul.mubr.bf16.gmra.mrb[0].mxu0 %v1509
      %v2243 = vpop.f32.mrb[0].mxu0
      %v2244 = vadd.f32 0.0, %v2243
      %v2245 = vpop.f32.mrb[0].mxu0
      %v2246 = vpop.f32.mrb[0].mxu0
      %v2247 = vadd.f32 0.0, %v2246
      %v2248 = vpop.f32.mrb[0].mxu0
      %2249 = vmatprep.mubr.bf16.mxu0 0
      %2250 = vmatmul.mubr.bf16.gmra.mrb[0].mxu0 %v1512
      %v2251 = vpop.f32.mrb[0].mxu0
      %v2252 = vadd.f32 0.0, %v2251
      %v2253 = vpop.f32.mrb[0].mxu0
      %v2254 = vpop.f32.mrb[0].mxu0
      %v2255 = vadd.f32 0.0, %v2254
      %v2256 = vpop.f32.mrb[0].mxu0
      %2257 = vmatprep.mubr.bf16.mxu0 0
      %2258 = vmatmul.mubr.bf16.gmra.mrb[0].mxu0 %v1515
      %v2259 = vpop.f32.mrb[0].mxu0
      %v2260 = vadd.f32 0.0, %v2259
      %v2261 = vpop.f32.mrb[0].mxu0
      %v2262 = vpop.f32.mrb[0].mxu0
      %v2263 = vadd.f32 0.0, %v2262
      %v2264 = vpop.f32.mrb[0].mxu0
      %2265 = vmatprep.mubr.bf16.mxu0 0
      %2266 = vmatmul.mubr.bf16.gmra.mrb[0].mxu0 %v1518
      %v2267 = vpop.f32.mrb[0].mxu0
      %v2268 = vadd.f32 0.0, %v2267
      %v2269 = vpop.f32.mrb[0].mxu0
      %v2270 = vpop.f32.mrb[0].mxu0
      %v2271 = vadd.f32 0.0, %v2270
      %v2272 = vpop.f32.mrb[0].mxu0
      %2273 = vmatprep.mubr.bf16.mxu0 0
      %2274 = vmatmul.mubr.bf16.gmra.mrb[0].mxu0 %v1521
      %v2275 = vpop.f32.mrb[0].mxu0
      %v2276 = vadd.f32 0.0, %v2275
      %v2277 = vpop.f32.mrb[0].mxu0
      %v2278 = vpop.f32.mrb[0].mxu0
      %v2279 = vadd.f32 0.0, %v2278
      %v2280 = vpop.f32.mrb[0].mxu0
      %2281 = vmatprep.mubr.bf16.mxu0 0
      %2282 = vmatmul.mubr.bf16.gmra.mrb[0].mxu0 %v1524
      %v2283 = vpop.f32.mrb[0].mxu0
      %v2284 = vadd.f32 0.0, %v2283
      %v2285 = vpop.f32.mrb[0].mxu0
      %v2286 = vpop.f32.mrb[0].mxu0
      %v2287 = vadd.f32 0.0, %v2286
      %v2288 = vpop.f32.mrb[0].mxu0
      %2289 = vmatprep.mubr.bf16.mxu0 0
      %2290 = vmatmul.mubr.bf16.gmra.mrb[0].mxu0 %v1527
      %v2291 = vpop.f32.mrb[0].mxu0
      %v2292 = vadd.f32 0.0, %v2291
      %v2293 = vpop.f32.mrb[0].mxu0
      %v2294 = vpop.f32.mrb[0].mxu0
      %v2295 = vadd.f32 0.0, %v2294
      %v2296 = vpop.f32.mrb[0].mxu0
      %2297 = vmatprep.mubr.bf16.mxu0 0
      %2298 = vmatmul.mubr.bf16.gmra.mrb[0].mxu0 %v1530
      %v2299 = vpop.f32.mrb[0].mxu0
      %v2300 = vadd.f32 0.0, %v2299
      %v2301 = vpop.f32.mrb[0].mxu0
      %v2302 = vpop.f32.mrb[0].mxu0
      %v2303 = vadd.f32 0.0, %v2302
      %v2304 = vpop.f32.mrb[0].mxu0
      %2305 = vmatprep.mubr.bf16.mxu0 0
      %2306 = vmatmul.mubr.bf16.gmra.mrb[0].mxu0 %v1533
      %v2307 = vpop.f32.mrb[0].mxu0
      %v2308 = vadd.f32 0.0, %v2307
      %v2309 = vpop.f32.mrb[0].mxu0
      %v2310 = vpop.f32.mrb[0].mxu0
      %v2311 = vadd.f32 0.0, %v2310
      %v2312 = vpop.f32.mrb[0].mxu0
      %2313 = vmatprep.mubr.bf16.mxu0 0
      %2314 = vmatmul.mubr.bf16.gmra.mrb[0].mxu0 %v1536
      %v2315 = vpop.f32.mrb[0].mxu0
      %v2316 = vadd.f32 0.0, %v2315
      %v2317 = vpop.f32.mrb[0].mxu0
      %v2318 = vpop.f32.mrb[0].mxu0
      %v2319 = vadd.f32 0.0, %v2318
      %v2320 = vpop.f32.mrb[0].mxu0
      %2321 = vmatprep.mubr.bf16.mxu0 0
      %2322 = vmatmul.mubr.bf16.gmra.mrb[0].mxu0 %v1539
      %v2323 = vpop.f32.mrb[0].mxu0
      %v2324 = vadd.f32 0.0, %v2323
      %v2325 = vpop.f32.mrb[0].mxu0
      %v2326 = vpop.f32.mrb[0].mxu0
      %v2327 = vadd.f32 0.0, %v2326
      %v2328 = vpop.f32.mrb[0].mxu0
      %2329 = vmatprep.mubr.bf16.mxu0 0
      %2330 = vmatmul.mubr.bf16.gmra.mrb[0].mxu0 %v1542
      %v2331 = vpop.f32.mrb[0].mxu0
      %v2332 = vadd.f32 0.0, %v2331
      %v2333 = vpop.f32.mrb[0].mxu0
      %v2334 = vpop.f32.mrb[0].mxu0
      %v2335 = vadd.f32 0.0, %v2334
      %v2336 = vpop.f32.mrb[0].mxu0
      %2337 = vmatprep.mubr.bf16.mxu0 0
      %2338 = vmatmul.mubr.bf16.gmra.mrb[0].mxu0 %v1545
      %v2339 = vpop.f32.mrb[0].mxu0
      %v2340 = vadd.f32 0.0, %v2339
      %v2341 = vpop.f32.mrb[0].mxu0
      %v2342 = vpop.f32.mrb[0].mxu0
      %v2343 = vadd.f32 0.0, %v2342
      %v2344 = vpop.f32.mrb[0].mxu0
      %2345 = vmatprep.mubr.bf16.mxu0 0
      %2346 = vmatmul.mubr.bf16.gmra.mrb[0].mxu0 %v1548
      %v2347 = vpop.f32.mrb[0].mxu0
      %v2348 = vadd.f32 0.0, %v2347
      %v2349 = vpop.f32.mrb[0].mxu0
      %v2350 = vpop.f32.mrb[0].mxu0
      %v2351 = vadd.f32 0.0, %v2350
      %v2352 = vpop.f32.mrb[0].mxu0
      %2353 = vmatprep.mubr.bf16.mxu0 0
      %2354 = vmatmul.mubr.bf16.gmra.mrb[0].mxu0 %v2196
      %v2355 = vpop.f32.mrb[0].mxu0
      %v2356 = vadd.f32 0.0, %v2355
      %v2357 = vpop.f32.mrb[0].mxu0
      %v2358 = vpop.f32.mrb[0].mxu0
      %v2359 = vadd.f32 0.0, %v2358
      %v2360 = vpop.f32.mrb[0].mxu0
      %2361 = vdwg.mxu0
      %v2362 = vadd.f32 %v2148, %v2236
      %v2363 = vadd.f32 %v2149, %v2239
      %v2364 = vadd.f32 %v2150, %v2244
      %v2365 = vadd.f32 %v2151, %v2247
      %v2366 = vadd.f32 %v2152, %v2252
      %v2367 = vadd.f32 %v2153, %v2255
      %v2368 = vadd.f32 %v2154, %v2260
      %v2369 = vadd.f32 %v2155, %v2263
      %v2370 = vadd.f32 %v2156, %v2268
      %v2371 = vadd.f32 %v2157, %v2271
      %v2372 = vadd.f32 %v2158, %v2276
      %v2373 = vadd.f32 %v2159, %v2279
      %v2374 = vadd.f32 %v2160, %v2284
      %v2375 = vadd.f32 %v2161, %v2287
      %v2376 = vadd.f32 %v2162, %v2292
      %v2377 = vadd.f32 %v2163, %v2295
      %v2378 = vadd.f32 %v2164, %v2300
      %v2379 = vadd.f32 %v2165, %v2303
      %v2380 = vadd.f32 %v2166, %v2308
      %v2381 = vadd.f32 %v2167, %v2311
      %v2382 = vadd.f32 %v2168, %v2316
      %v2383 = vadd.f32 %v2169, %v2319
      %v2384 = vadd.f32 %v2170, %v2324
      %v2385 = vadd.f32 %v2171, %v2327
      %v2386 = vadd.f32 %v2172, %v2332
      %v2387 = vadd.f32 %v2173, %v2335
      %v2388 = vadd.f32 %v2174, %v2340
      %v2389 = vadd.f32 %v2175, %v2343
      %v2390 = vadd.f32 %v2176, %v2348
      %v2391 = vadd.f32 %v2177, %v2351
      %v2392 = vadd.f32 %v2178, %v2356
      %v2393 = vadd.f32 %v2179, %v2359
      %v2396 = vunpack.c.l.b16 %v370
      %v2397 = vunpack.c.l.b16 %v371
      %v2398 = vpack.c.b16 %v2397, %v2396
      %v2400 = vsel %vm817, %v2398, 0
      %v2403 = vsel %vm866, %v376, 0
      %2405 = vmatprep.subr.bf16.mxu0 0
      %2406 = vmatpush1.bf16.msra.mxu0 %v2403
      %2407 = vmatprep.subr.bf16.mxu0 0
      %2408 = vmatpush1.bf16.msra.mxu0 0
      %2409 = vmatprep.subr.bf16.mxu0 0
      %2410 = vmatpush1.bf16.msra.mxu0 0
      %2411 = vmatprep.subr.bf16.mxu0 0
      %2412 = vmatpush1.bf16.msra.mxu0 0
      %2413 = vmatprep.subr.bf16.mxu0 0
      %2414 = vmatpush1.bf16.msra.mxu0 0
      %2415 = vmatprep.subr.bf16.mxu0 0
      %2416 = vmatpush1.bf16.msra.mxu0 0
      %2417 = vmatprep.subr.bf16.mxu0 0
      %2418 = vmatpush1.bf16.msra.mxu0 0
      %2419 = vmatprep.subr.bf16.mxu0 0
      %2420 = vmatpush1.bf16.msra.mxu0 0
      %2421 = vmatprep.subr.bf16.mxu0 0
      %2422 = vmatpush1.bf16.msra.mxu0 0
      %2423 = vmatprep.subr.bf16.mxu0 0
      %2424 = vmatpush1.bf16.msra.mxu0 0
      %2425 = vmatprep.subr.bf16.mxu0 0
      %2426 = vmatpush1.bf16.msra.mxu0 0
      %2427 = vmatprep.subr.bf16.mxu0 0
      %2428 = vmatpush1.bf16.msra.mxu0 0
      %2429 = vmatprep.subr.bf16.mxu0 0
      %2430 = vmatpush1.bf16.msra.mxu0 0
      %2431 = vmatprep.subr.bf16.mxu0 0
      %2432 = vmatpush1.bf16.msra.mxu0 0
      %2433 = vmatprep.subr.bf16.mxu0 0
      %2434 = vmatpush1.bf16.msra.mxu0 0
      %2435 = vmatprep.subr.bf16.mxu0 0
      %2436 = vmatpush1.bf16.msra.mxu0 0
      %2437 = vmatprep.mubr.bf16.mxu0 0
      %2438 = vmatmul.mubr.bf16.gmra.mrb[0].mxu0 %v1118
      %v2439 = vpop.f32.mrb[0].mxu0
      %v2440 = vadd.f32 0.0, %v2439
      %v2441 = vpop.f32.mrb[0].mxu0
      %v2442 = vpop.f32.mrb[0].mxu0
      %v2443 = vadd.f32 0.0, %v2442
      %v2444 = vpop.f32.mrb[0].mxu0
      %2445 = vmatprep.mubr.bf16.mxu0 0
      %2446 = vmatmul.mubr.bf16.gmra.mrb[0].mxu0 %v1121
      %v2447 = vpop.f32.mrb[0].mxu0
      %v2448 = vadd.f32 0.0, %v2447
      %v2449 = vpop.f32.mrb[0].mxu0
      %v2450 = vpop.f32.mrb[0].mxu0
      %v2451 = vadd.f32 0.0, %v2450
      %v2452 = vpop.f32.mrb[0].mxu0
      %2453 = vmatprep.mubr.bf16.mxu0 0
      %2454 = vmatmul.mubr.bf16.gmra.mrb[0].mxu0 %v1124
      %v2455 = vpop.f32.mrb[0].mxu0
      %v2456 = vadd.f32 0.0, %v2455
      %v2457 = vpop.f32.mrb[0].mxu0
      %v2458 = vpop.f32.mrb[0].mxu0
      %v2459 = vadd.f32 0.0, %v2458
      %v2460 = vpop.f32.mrb[0].mxu0
      %2461 = vmatprep.mubr.bf16.mxu0 0
      %2462 = vmatmul.mubr.bf16.gmra.mrb[0].mxu0 %v1127
      %v2463 = vpop.f32.mrb[0].mxu0
      %v2464 = vadd.f32 0.0, %v2463
      %v2465 = vpop.f32.mrb[0].mxu0
      %v2466 = vpop.f32.mrb[0].mxu0
      %v2467 = vadd.f32 0.0, %v2466
      %v2468 = vpop.f32.mrb[0].mxu0
      %2469 = vmatprep.mubr.bf16.mxu0 0
      %2470 = vmatmul.mubr.bf16.gmra.mrb[0].mxu0 %v1130
      %v2471 = vpop.f32.mrb[0].mxu0
      %v2472 = vadd.f32 0.0, %v2471
      %v2473 = vpop.f32.mrb[0].mxu0
      %v2474 = vpop.f32.mrb[0].mxu0
      %v2475 = vadd.f32 0.0, %v2474
      %v2476 = vpop.f32.mrb[0].mxu0
      %2477 = vmatprep.mubr.bf16.mxu0 0
      %2478 = vmatmul.mubr.bf16.gmra.mrb[0].mxu0 %v1133
      %v2479 = vpop.f32.mrb[0].mxu0
      %v2480 = vadd.f32 0.0, %v2479
      %v2481 = vpop.f32.mrb[0].mxu0
      %v2482 = vpop.f32.mrb[0].mxu0
      %v2483 = vadd.f32 0.0, %v2482
      %v2484 = vpop.f32.mrb[0].mxu0
      %2485 = vmatprep.mubr.bf16.mxu0 0
      %2486 = vmatmul.mubr.bf16.gmra.mrb[0].mxu0 %v1136
      %v2487 = vpop.f32.mrb[0].mxu0
      %v2488 = vadd.f32 0.0, %v2487
      %v2489 = vpop.f32.mrb[0].mxu0
      %v2490 = vpop.f32.mrb[0].mxu0
      %v2491 = vadd.f32 0.0, %v2490
      %v2492 = vpop.f32.mrb[0].mxu0
      %2493 = vmatprep.mubr.bf16.mxu0 0
      %2494 = vmatmul.mubr.bf16.gmra.mrb[0].mxu0 %v1139
      %v2495 = vpop.f32.mrb[0].mxu0
      %v2496 = vadd.f32 0.0, %v2495
      %v2497 = vpop.f32.mrb[0].mxu0
      %v2498 = vpop.f32.mrb[0].mxu0
      %v2499 = vadd.f32 0.0, %v2498
      %v2500 = vpop.f32.mrb[0].mxu0
      %2501 = vmatprep.mubr.bf16.mxu0 0
      %2502 = vmatmul.mubr.bf16.gmra.mrb[0].mxu0 %v1142
      %v2503 = vpop.f32.mrb[0].mxu0
      %v2504 = vadd.f32 0.0, %v2503
      %v2505 = vpop.f32.mrb[0].mxu0
      %v2506 = vpop.f32.mrb[0].mxu0
      %v2507 = vadd.f32 0.0, %v2506
      %v2508 = vpop.f32.mrb[0].mxu0
      %2509 = vmatprep.mubr.bf16.mxu0 0
      %2510 = vmatmul.mubr.bf16.gmra.mrb[0].mxu0 %v1145
      %v2511 = vpop.f32.mrb[0].mxu0
      %v2512 = vadd.f32 0.0, %v2511
      %v2513 = vpop.f32.mrb[0].mxu0
      %v2514 = vpop.f32.mrb[0].mxu0
      %v2515 = vadd.f32 0.0, %v2514
      %v2516 = vpop.f32.mrb[0].mxu0
      %2517 = vmatprep.mubr.bf16.mxu0 0
      %2518 = vmatmul.mubr.bf16.gmra.mrb[0].mxu0 %v1148
      %v2519 = vpop.f32.mrb[0].mxu0
      %v2520 = vadd.f32 0.0, %v2519
      %v2521 = vpop.f32.mrb[0].mxu0
      %v2522 = vpop.f32.mrb[0].mxu0
      %v2523 = vadd.f32 0.0, %v2522
      %v2524 = vpop.f32.mrb[0].mxu0
      %2525 = vmatprep.mubr.bf16.mxu0 0
      %2526 = vmatmul.mubr.bf16.gmra.mrb[0].mxu0 %v1151
      %v2527 = vpop.f32.mrb[0].mxu0
      %v2528 = vadd.f32 0.0, %v2527
      %v2529 = vpop.f32.mrb[0].mxu0
      %v2530 = vpop.f32.mrb[0].mxu0
      %v2531 = vadd.f32 0.0, %v2530
      %v2532 = vpop.f32.mrb[0].mxu0
      %2533 = vmatprep.mubr.bf16.mxu0 0
      %2534 = vmatmul.mubr.bf16.gmra.mrb[0].mxu0 %v1154
      %v2535 = vpop.f32.mrb[0].mxu0
      %v2536 = vadd.f32 0.0, %v2535
      %v2537 = vpop.f32.mrb[0].mxu0
      %v2538 = vpop.f32.mrb[0].mxu0
      %v2539 = vadd.f32 0.0, %v2538
      %v2540 = vpop.f32.mrb[0].mxu0
      %2541 = vmatprep.mubr.bf16.mxu0 0
      %2542 = vmatmul.mubr.bf16.gmra.mrb[0].mxu0 %v1157
      %v2543 = vpop.f32.mrb[0].mxu0
      %v2544 = vadd.f32 0.0, %v2543
      %v2545 = vpop.f32.mrb[0].mxu0
      %v2546 = vpop.f32.mrb[0].mxu0
      %v2547 = vadd.f32 0.0, %v2546
      %v2548 = vpop.f32.mrb[0].mxu0
      %2549 = vmatprep.mubr.bf16.mxu0 0
      %2550 = vmatmul.mubr.bf16.gmra.mrb[0].mxu0 %v1756
      %v2551 = vpop.f32.mrb[0].mxu0
      %v2552 = vadd.f32 0.0, %v2551
      %v2553 = vpop.f32.mrb[0].mxu0
      %v2554 = vpop.f32.mrb[0].mxu0
      %v2555 = vadd.f32 0.0, %v2554
      %v2556 = vpop.f32.mrb[0].mxu0
      %2557 = vmatprep.mubr.bf16.mxu0 0
      %2558 = vmatmul.mubr.bf16.gmra.mrb[0].mxu0 %v2400
      %v2559 = vpop.f32.mrb[0].mxu0
      %v2560 = vadd.f32 0.0, %v2559
      %v2561 = vpop.f32.mrb[0].mxu0
      %v2562 = vpop.f32.mrb[0].mxu0
      %v2563 = vadd.f32 0.0, %v2562
      %v2564 = vpop.f32.mrb[0].mxu0
      %2565 = vdwg.mxu0
      %v2566 = vadd.f32 %v2362, %v2440
      %v2567 = vadd.f32 %v2363, %v2443
      %v2568 = vadd.f32 %v2364, %v2448
      %v2569 = vadd.f32 %v2365, %v2451
      %v2570 = vadd.f32 %v2366, %v2456
      %v2571 = vadd.f32 %v2367, %v2459
      %v2572 = vadd.f32 %v2368, %v2464
      %v2573 = vadd.f32 %v2369, %v2467
      %v2574 = vadd.f32 %v2370, %v2472
      %v2575 = vadd.f32 %v2371, %v2475
      %v2576 = vadd.f32 %v2372, %v2480
      %v2577 = vadd.f32 %v2373, %v2483
      %v2578 = vadd.f32 %v2374, %v2488
      %v2579 = vadd.f32 %v2375, %v2491
      %v2580 = vadd.f32 %v2376, %v2496
      %v2581 = vadd.f32 %v2377, %v2499
      %v2582 = vadd.f32 %v2378, %v2504
      %v2583 = vadd.f32 %v2379, %v2507
      %v2584 = vadd.f32 %v2380, %v2512
      %v2585 = vadd.f32 %v2381, %v2515
      %v2586 = vadd.f32 %v2382, %v2520
      %v2587 = vadd.f32 %v2383, %v2523
      %v2588 = vadd.f32 %v2384, %v2528
      %v2589 = vadd.f32 %v2385, %v2531
      %v2590 = vadd.f32 %v2386, %v2536
      %v2591 = vadd.f32 %v2387, %v2539
      %v2592 = vadd.f32 %v2388, %v2544
      %v2593 = vadd.f32 %v2389, %v2547
      %v2594 = vadd.f32 %v2390, %v2552
      %v2595 = vadd.f32 %v2391, %v2555
      %v2596 = vadd.f32 %v2392, %v2560
      %v2597 = vadd.f32 %v2393, %v2563
      %v2599 = vshrl.u32 %v370, 16
      %v2601 = vrot.slane %v2599, 4
      %v2602 = vshll.u32 %v370, 16
      %v2604 = vrot.slane %v2602, 5
      %v2605 = vor.u32 %v2601, %v2604
      %v2606 = vrot.slane %v2605, 4
      %v2608 = vshll.u32 %v371, 16
      %v2610 = vrot.slane %v2608, 5
      %v2611 = vsel %vm380, %v2606, %v2610
      %v2612 = vshrl.u32 %v371, 16
      %v2614 = vrot.slane %v2612, 4
      %v2615 = vor.u32 %v2614, %v2610
      %v2616 = vrot.slane %v2615, 4
      %v2618 = vshll.u32 %v372, 16
      %v2620 = vrot.slane %v2618, 5
      %v2621 = vsel %vm380, %v2616, %v2620
      %v2622 = vunpack.c.l.b16 %v2611
      %v2623 = vunpack.c.l.b16 %v2621
      %v2624 = vpack.c.b16 %v2623, %v2622
      %v2626 = vunpack.c.l.b16 %v376
      %v2627 = vpack.c.b16 %v2626, %v2626
      %v2628 = vrot.slane %v2627, 2
      %v2630 = vsel %vm817, %v2624, 0
      %v2633 = vsel %vm866, %v2628, 0
      %2635 = vmatprep.subr.bf16.mxu0 0
      %2636 = vmatpush1.bf16.msra.mxu0 %v2633
      %2637 = vmatprep.subr.bf16.mxu0 0
      %2638 = vmatpush1.bf16.msra.mxu0 0
      %2639 = vmatprep.subr.bf16.mxu0 0
      %2640 = vmatpush1.bf16.msra.mxu0 0
      %2641 = vmatprep.subr.bf16.mxu0 0
      %2642 = vmatpush1.bf16.msra.mxu0 0
      %2643 = vmatprep.subr.bf16.mxu0 0
      %2644 = vmatpush1.bf16.msra.mxu0 0
      %2645 = vmatprep.subr.bf16.mxu0 0
      %2646 = vmatpush1.bf16.msra.mxu0 0
      %2647 = vmatprep.subr.bf16.mxu0 0
      %2648 = vmatpush1.bf16.msra.mxu0 0
      %2649 = vmatprep.subr.bf16.mxu0 0
      %2650 = vmatpush1.bf16.msra.mxu0 0
      %2651 = vmatprep.subr.bf16.mxu0 0
      %2652 = vmatpush1.bf16.msra.mxu0 0
      %2653 = vmatprep.subr.bf16.mxu0 0
      %2654 = vmatpush1.bf16.msra.mxu0 0
      %2655 = vmatprep.subr.bf16.mxu0 0
      %2656 = vmatpush1.bf16.msra.mxu0 0
      %2657 = vmatprep.subr.bf16.mxu0 0
      %2658 = vmatpush1.bf16.msra.mxu0 0
      %2659 = vmatprep.subr.bf16.mxu0 0
      %2660 = vmatpush1.bf16.msra.mxu0 0
      %2661 = vmatprep.subr.bf16.mxu0 0
      %2662 = vmatpush1.bf16.msra.mxu0 0
      %2663 = vmatprep.subr.bf16.mxu0 0
      %2664 = vmatpush1.bf16.msra.mxu0 0
      %2665 = vmatprep.subr.bf16.mxu0 0
      %2666 = vmatpush1.bf16.msra.mxu0 0
      %2667 = vmatprep.mubr.bf16.mxu0 0
      %2668 = vmatmul.mubr.bf16.gmra.mrb[0].mxu0 %v825
      %v2669 = vpop.f32.mrb[0].mxu0
      %v2670 = vadd.f32 0.0, %v2669
      %v2671 = vpop.f32.mrb[0].mxu0
      %v2672 = vpop.f32.mrb[0].mxu0
      %v2673 = vadd.f32 0.0, %v2672
      %v2674 = vpop.f32.mrb[0].mxu0
      %2675 = vmatprep.mubr.bf16.mxu0 0
      %2676 = vmatmul.mubr.bf16.gmra.mrb[0].mxu0 %v828
      %v2677 = vpop.f32.mrb[0].mxu0
      %v2678 = vadd.f32 0.0, %v2677
      %v2679 = vpop.f32.mrb[0].mxu0
      %v2680 = vpop.f32.mrb[0].mxu0
      %v2681 = vadd.f32 0.0, %v2680
      %v2682 = vpop.f32.mrb[0].mxu0
      %2683 = vmatprep.mubr.bf16.mxu0 0
      %2684 = vmatmul.mubr.bf16.gmra.mrb[0].mxu0 %v831
      %v2685 = vpop.f32.mrb[0].mxu0
      %v2686 = vadd.f32 0.0, %v2685
      %v2687 = vpop.f32.mrb[0].mxu0
      %v2688 = vpop.f32.mrb[0].mxu0
      %v2689 = vadd.f32 0.0, %v2688
      %v2690 = vpop.f32.mrb[0].mxu0
      %2691 = vmatprep.mubr.bf16.mxu0 0
      %2692 = vmatmul.mubr.bf16.gmra.mrb[0].mxu0 %v834
      %v2693 = vpop.f32.mrb[0].mxu0
      %v2694 = vadd.f32 0.0, %v2693
      %v2695 = vpop.f32.mrb[0].mxu0
      %v2696 = vpop.f32.mrb[0].mxu0
      %v2697 = vadd.f32 0.0, %v2696
      %v2698 = vpop.f32.mrb[0].mxu0
      %2699 = vmatprep.mubr.bf16.mxu0 0
      %2700 = vmatmul.mubr.bf16.gmra.mrb[0].mxu0 %v837
      %v2701 = vpop.f32.mrb[0].mxu0
      %v2702 = vadd.f32 0.0, %v2701
      %v2703 = vpop.f32.mrb[0].mxu0
      %v2704 = vpop.f32.mrb[0].mxu0
      %v2705 = vadd.f32 0.0, %v2704
      %v2706 = vpop.f32.mrb[0].mxu0
      %2707 = vmatprep.mubr.bf16.mxu0 0
      %2708 = vmatmul.mubr.bf16.gmra.mrb[0].mxu0 %v840
      %v2709 = vpop.f32.mrb[0].mxu0
      %v2710 = vadd.f32 0.0, %v2709
      %v2711 = vpop.f32.mrb[0].mxu0
      %v2712 = vpop.f32.mrb[0].mxu0
      %v2713 = vadd.f32 0.0, %v2712
      %v2714 = vpop.f32.mrb[0].mxu0
      %2715 = vmatprep.mubr.bf16.mxu0 0
      %2716 = vmatmul.mubr.bf16.gmra.mrb[0].mxu0 %v843
      %v2717 = vpop.f32.mrb[0].mxu0
      %v2718 = vadd.f32 0.0, %v2717
      %v2719 = vpop.f32.mrb[0].mxu0
      %v2720 = vpop.f32.mrb[0].mxu0
      %v2721 = vadd.f32 0.0, %v2720
      %v2722 = vpop.f32.mrb[0].mxu0
      %2723 = vmatprep.mubr.bf16.mxu0 0
      %2724 = vmatmul.mubr.bf16.gmra.mrb[0].mxu0 %v846
      %v2725 = vpop.f32.mrb[0].mxu0
      %v2726 = vadd.f32 0.0, %v2725
      %v2727 = vpop.f32.mrb[0].mxu0
      %v2728 = vpop.f32.mrb[0].mxu0
      %v2729 = vadd.f32 0.0, %v2728
      %v2730 = vpop.f32.mrb[0].mxu0
      %2731 = vmatprep.mubr.bf16.mxu0 0
      %2732 = vmatmul.mubr.bf16.gmra.mrb[0].mxu0 %v849
      %v2733 = vpop.f32.mrb[0].mxu0
      %v2734 = vadd.f32 0.0, %v2733
      %v2735 = vpop.f32.mrb[0].mxu0
      %v2736 = vpop.f32.mrb[0].mxu0
      %v2737 = vadd.f32 0.0, %v2736
      %v2738 = vpop.f32.mrb[0].mxu0
      %2739 = vmatprep.mubr.bf16.mxu0 0
      %2740 = vmatmul.mubr.bf16.gmra.mrb[0].mxu0 %v852
      %v2741 = vpop.f32.mrb[0].mxu0
      %v2742 = vadd.f32 0.0, %v2741
      %v2743 = vpop.f32.mrb[0].mxu0
      %v2744 = vpop.f32.mrb[0].mxu0
      %v2745 = vadd.f32 0.0, %v2744
      %v2746 = vpop.f32.mrb[0].mxu0
      %2747 = vmatprep.mubr.bf16.mxu0 0
      %2748 = vmatmul.mubr.bf16.gmra.mrb[0].mxu0 %v855
      %v2749 = vpop.f32.mrb[0].mxu0
      %v2750 = vadd.f32 0.0, %v2749
      %v2751 = vpop.f32.mrb[0].mxu0
      %v2752 = vpop.f32.mrb[0].mxu0
      %v2753 = vadd.f32 0.0, %v2752
      %v2754 = vpop.f32.mrb[0].mxu0
      %2755 = vmatprep.mubr.bf16.mxu0 0
      %2756 = vmatmul.mubr.bf16.gmra.mrb[0].mxu0 %v858
      %v2757 = vpop.f32.mrb[0].mxu0
      %v2758 = vadd.f32 0.0, %v2757
      %v2759 = vpop.f32.mrb[0].mxu0
      %v2760 = vpop.f32.mrb[0].mxu0
      %v2761 = vadd.f32 0.0, %v2760
      %v2762 = vpop.f32.mrb[0].mxu0
      %2763 = vmatprep.mubr.bf16.mxu0 0
      %2764 = vmatmul.mubr.bf16.gmra.mrb[0].mxu0 %v861
      %v2765 = vpop.f32.mrb[0].mxu0
      %v2766 = vadd.f32 0.0, %v2765
      %v2767 = vpop.f32.mrb[0].mxu0
      %v2768 = vpop.f32.mrb[0].mxu0
      %v2769 = vadd.f32 0.0, %v2768
      %v2770 = vpop.f32.mrb[0].mxu0
      %2771 = vmatprep.mubr.bf16.mxu0 0
      %2772 = vmatmul.mubr.bf16.gmra.mrb[0].mxu0 %v864
      %v2773 = vpop.f32.mrb[0].mxu0
      %v2774 = vadd.f32 0.0, %v2773
      %v2775 = vpop.f32.mrb[0].mxu0
      %v2776 = vpop.f32.mrb[0].mxu0
      %v2777 = vadd.f32 0.0, %v2776
      %v2778 = vpop.f32.mrb[0].mxu0
      %2779 = vmatprep.mubr.bf16.mxu0 0
      %2780 = vmatmul.mubr.bf16.gmra.mrb[0].mxu0 %v1982
      %v2781 = vpop.f32.mrb[0].mxu0
      %v2782 = vadd.f32 0.0, %v2781
      %v2783 = vpop.f32.mrb[0].mxu0
      %v2784 = vpop.f32.mrb[0].mxu0
      %v2785 = vadd.f32 0.0, %v2784
      %v2786 = vpop.f32.mrb[0].mxu0
      %2787 = vmatprep.mubr.bf16.mxu0 0
      %2788 = vmatmul.mubr.bf16.gmra.mrb[0].mxu0 %v2630
      %v2789 = vpop.f32.mrb[0].mxu0
      %v2790 = vadd.f32 0.0, %v2789
      %v2791 = vpop.f32.mrb[0].mxu0
      %v2792 = vpop.f32.mrb[0].mxu0
      %v2793 = vadd.f32 0.0, %v2792
      %v2794 = vpop.f32.mrb[0].mxu0
      %2795 = vdwg.mxu0
      %v2796 = vadd.f32 %v2566, %v2670
      %v2797 = vadd.f32 %v2567, %v2673
      %v2798 = vadd.f32 %v2568, %v2678
      %v2799 = vadd.f32 %v2569, %v2681
      %v2800 = vadd.f32 %v2570, %v2686
      %v2801 = vadd.f32 %v2571, %v2689
      %v2802 = vadd.f32 %v2572, %v2694
      %v2803 = vadd.f32 %v2573, %v2697
      %v2804 = vadd.f32 %v2574, %v2702
      %v2805 = vadd.f32 %v2575, %v2705
      %v2806 = vadd.f32 %v2576, %v2710
      %v2807 = vadd.f32 %v2577, %v2713
      %v2808 = vadd.f32 %v2578, %v2718
      %v2809 = vadd.f32 %v2579, %v2721
      %v2810 = vadd.f32 %v2580, %v2726
      %v2811 = vadd.f32 %v2581, %v2729
      %v2812 = vadd.f32 %v2582, %v2734
      %v2813 = vadd.f32 %v2583, %v2737
      %v2814 = vadd.f32 %v2584, %v2742
      %v2815 = vadd.f32 %v2585, %v2745
      %v2816 = vadd.f32 %v2586, %v2750
      %v2817 = vadd.f32 %v2587, %v2753
      %v2818 = vadd.f32 %v2588, %v2758
      %v2819 = vadd.f32 %v2589, %v2761
      %v2820 = vadd.f32 %v2590, %v2766
      %v2821 = vadd.f32 %v2591, %v2769
      %v2822 = vadd.f32 %v2592, %v2774
      %v2823 = vadd.f32 %v2593, %v2777
      %v2824 = vadd.f32 %v2594, %v2782
      %v2825 = vadd.f32 %v2595, %v2785
      %v2826 = vadd.f32 %v2596, %v2790
      %v2827 = vadd.f32 %v2597, %v2793
      %v2829 = vrot.slane %v370, 5
      %v2830 = vrot.slane %v2829, 4
      %v2831 = vrot.slane %v371, 5
      %v2832 = vsel %vm1341, %v2830, %v2831
      %v2833 = vrot.slane %v2831, 4
      %v2834 = vrot.slane %v372, 5
      %v2835 = vsel %vm1341, %v2833, %v2834
      %v2836 = vunpack.c.l.b16 %v2832
      %v2837 = vunpack.c.l.b16 %v2835
      %v2838 = vpack.c.b16 %v2837, %v2836
      %v2840 = vsel %vm817, %v2838, 0
      %v2843 = vsel %vm866, %v377, 0
      %2845 = vmatprep.subr.bf16.mxu0 0
      %2846 = vmatpush1.bf16.msra.mxu0 %v2843
      %2847 = vmatprep.subr.bf16.mxu0 0
      %2848 = vmatpush1.bf16.msra.mxu0 0
      %2849 = vmatprep.subr.bf16.mxu0 0
      %2850 = vmatpush1.bf16.msra.mxu0 0
      %2851 = vmatprep.subr.bf16.mxu0 0
      %2852 = vmatpush1.bf16.msra.mxu0 0
      %2853 = vmatprep.subr.bf16.mxu0 0
      %2854 = vmatpush1.bf16.msra.mxu0 0
      %2855 = vmatprep.subr.bf16.mxu0 0
      %2856 = vmatpush1.bf16.msra.mxu0 0
      %2857 = vmatprep.subr.bf16.mxu0 0
      %2858 = vmatpush1.bf16.msra.mxu0 0
      %2859 = vmatprep.subr.bf16.mxu0 0
      %2860 = vmatpush1.bf16.msra.mxu0 0
      %2861 = vmatprep.subr.bf16.mxu0 0
      %2862 = vmatpush1.bf16.msra.mxu0 0
      %2863 = vmatprep.subr.bf16.mxu0 0
      %2864 = vmatpush1.bf16.msra.mxu0 0
      %2865 = vmatprep.subr.bf16.mxu0 0
      %2866 = vmatpush1.bf16.msra.mxu0 0
      %2867 = vmatprep.subr.bf16.mxu0 0
      %2868 = vmatpush1.bf16.msra.mxu0 0
      %2869 = vmatprep.subr.bf16.mxu0 0
      %2870 = vmatpush1.bf16.msra.mxu0 0
      %2871 = vmatprep.subr.bf16.mxu0 0
      %2872 = vmatpush1.bf16.msra.mxu0 0
      %2873 = vmatprep.subr.bf16.mxu0 0
      %2874 = vmatpush1.bf16.msra.mxu0 0
      %2875 = vmatprep.subr.bf16.mxu0 0
      %2876 = vmatpush1.bf16.msra.mxu0 0
      %2877 = vmatprep.mubr.bf16.mxu0 0
      %2878 = vmatmul.mubr.bf16.gmra.mrb[0].mxu0 %v1509
      %v2879 = vpop.f32.mrb[0].mxu0
      %v2880 = vadd.f32 0.0, %v2879
      %v2881 = vpop.f32.mrb[0].mxu0
      %v2882 = vpop.f32.mrb[0].mxu0
      %v2883 = vadd.f32 0.0, %v2882
      %v2884 = vpop.f32.mrb[0].mxu0
      %2885 = vmatprep.mubr.bf16.mxu0 0
      %2886 = vmatmul.mubr.bf16.gmra.mrb[0].mxu0 %v1512
      %v2887 = vpop.f32.mrb[0].mxu0
      %v2888 = vadd.f32 0.0, %v2887
      %v2889 = vpop.f32.mrb[0].mxu0
      %v2890 = vpop.f32.mrb[0].mxu0
      %v2891 = vadd.f32 0.0, %v2890
      %v2892 = vpop.f32.mrb[0].mxu0
      %2893 = vmatprep.mubr.bf16.mxu0 0
      %2894 = vmatmul.mubr.bf16.gmra.mrb[0].mxu0 %v1515
      %v2895 = vpop.f32.mrb[0].mxu0
      %v2896 = vadd.f32 0.0, %v2895
      %v2897 = vpop.f32.mrb[0].mxu0
      %v2898 = vpop.f32.mrb[0].mxu0
      %v2899 = vadd.f32 0.0, %v2898
      %v2900 = vpop.f32.mrb[0].mxu0
      %2901 = vmatprep.mubr.bf16.mxu0 0
      %2902 = vmatmul.mubr.bf16.gmra.mrb[0].mxu0 %v1518
      %v2903 = vpop.f32.mrb[0].mxu0
      %v2904 = vadd.f32 0.0, %v2903
      %v2905 = vpop.f32.mrb[0].mxu0
      %v2906 = vpop.f32.mrb[0].mxu0
      %v2907 = vadd.f32 0.0, %v2906
      %v2908 = vpop.f32.mrb[0].mxu0
      %2909 = vmatprep.mubr.bf16.mxu0 0
      %2910 = vmatmul.mubr.bf16.gmra.mrb[0].mxu0 %v1521
      %v2911 = vpop.f32.mrb[0].mxu0
      %v2912 = vadd.f32 0.0, %v2911
      %v2913 = vpop.f32.mrb[0].mxu0
      %v2914 = vpop.f32.mrb[0].mxu0
      %v2915 = vadd.f32 0.0, %v2914
      %v2916 = vpop.f32.mrb[0].mxu0
      %2917 = vmatprep.mubr.bf16.mxu0 0
      %2918 = vmatmul.mubr.bf16.gmra.mrb[0].mxu0 %v1524
      %v2919 = vpop.f32.mrb[0].mxu0
      %v2920 = vadd.f32 0.0, %v2919
      %v2921 = vpop.f32.mrb[0].mxu0
      %v2922 = vpop.f32.mrb[0].mxu0
      %v2923 = vadd.f32 0.0, %v2922
      %v2924 = vpop.f32.mrb[0].mxu0
      %2925 = vmatprep.mubr.bf16.mxu0 0
      %2926 = vmatmul.mubr.bf16.gmra.mrb[0].mxu0 %v1527
      %v2927 = vpop.f32.mrb[0].mxu0
      %v2928 = vadd.f32 0.0, %v2927
      %v2929 = vpop.f32.mrb[0].mxu0
      %v2930 = vpop.f32.mrb[0].mxu0
      %v2931 = vadd.f32 0.0, %v2930
      %v2932 = vpop.f32.mrb[0].mxu0
      %2933 = vmatprep.mubr.bf16.mxu0 0
      %2934 = vmatmul.mubr.bf16.gmra.mrb[0].mxu0 %v1530
      %v2935 = vpop.f32.mrb[0].mxu0
      %v2936 = vadd.f32 0.0, %v2935
      %v2937 = vpop.f32.mrb[0].mxu0
      %v2938 = vpop.f32.mrb[0].mxu0
      %v2939 = vadd.f32 0.0, %v2938
      %v2940 = vpop.f32.mrb[0].mxu0
      %2941 = vmatprep.mubr.bf16.mxu0 0
      %2942 = vmatmul.mubr.bf16.gmra.mrb[0].mxu0 %v1533
      %v2943 = vpop.f32.mrb[0].mxu0
      %v2944 = vadd.f32 0.0, %v2943
      %v2945 = vpop.f32.mrb[0].mxu0
      %v2946 = vpop.f32.mrb[0].mxu0
      %v2947 = vadd.f32 0.0, %v2946
      %v2948 = vpop.f32.mrb[0].mxu0
      %2949 = vmatprep.mubr.bf16.mxu0 0
      %2950 = vmatmul.mubr.bf16.gmra.mrb[0].mxu0 %v1536
      %v2951 = vpop.f32.mrb[0].mxu0
      %v2952 = vadd.f32 0.0, %v2951
      %v2953 = vpop.f32.mrb[0].mxu0
      %v2954 = vpop.f32.mrb[0].mxu0
      %v2955 = vadd.f32 0.0, %v2954
      %v2956 = vpop.f32.mrb[0].mxu0
      %2957 = vmatprep.mubr.bf16.mxu0 0
      %2958 = vmatmul.mubr.bf16.gmra.mrb[0].mxu0 %v1539
      %v2959 = vpop.f32.mrb[0].mxu0
      %v2960 = vadd.f32 0.0, %v2959
      %v2961 = vpop.f32.mrb[0].mxu0
      %v2962 = vpop.f32.mrb[0].mxu0
      %v2963 = vadd.f32 0.0, %v2962
      %v2964 = vpop.f32.mrb[0].mxu0
      %2965 = vmatprep.mubr.bf16.mxu0 0
      %2966 = vmatmul.mubr.bf16.gmra.mrb[0].mxu0 %v1542
      %v2967 = vpop.f32.mrb[0].mxu0
      %v2968 = vadd.f32 0.0, %v2967
      %v2969 = vpop.f32.mrb[0].mxu0
      %v2970 = vpop.f32.mrb[0].mxu0
      %v2971 = vadd.f32 0.0, %v2970
      %v2972 = vpop.f32.mrb[0].mxu0
      %2973 = vmatprep.mubr.bf16.mxu0 0
      %2974 = vmatmul.mubr.bf16.gmra.mrb[0].mxu0 %v1545
      %v2975 = vpop.f32.mrb[0].mxu0
      %v2976 = vadd.f32 0.0, %v2975
      %v2977 = vpop.f32.mrb[0].mxu0
      %v2978 = vpop.f32.mrb[0].mxu0
      %v2979 = vadd.f32 0.0, %v2978
      %v2980 = vpop.f32.mrb[0].mxu0
      %2981 = vmatprep.mubr.bf16.mxu0 0
      %2982 = vmatmul.mubr.bf16.gmra.mrb[0].mxu0 %v1548
      %v2983 = vpop.f32.mrb[0].mxu0
      %v2984 = vadd.f32 0.0, %v2983
      %v2985 = vpop.f32.mrb[0].mxu0
      %v2986 = vpop.f32.mrb[0].mxu0
      %v2987 = vadd.f32 0.0, %v2986
      %v2988 = vpop.f32.mrb[0].mxu0
      %2989 = vmatprep.mubr.bf16.mxu0 0
      %2990 = vmatmul.mubr.bf16.gmra.mrb[0].mxu0 %v2196
      %v2991 = vpop.f32.mrb[0].mxu0
      %v2992 = vadd.f32 0.0, %v2991
      %v2993 = vpop.f32.mrb[0].mxu0
      %v2994 = vpop.f32.mrb[0].mxu0
      %v2995 = vadd.f32 0.0, %v2994
      %v2996 = vpop.f32.mrb[0].mxu0
      %2997 = vmatprep.mubr.bf16.mxu0 0
      %2998 = vmatmul.mubr.bf16.gmra.mrb[0].mxu0 %v2840
      %v2999 = vpop.f32.mrb[0].mxu0
      %v3000 = vadd.f32 0.0, %v2999
      %v3001 = vpop.f32.mrb[0].mxu0
      %v3002 = vpop.f32.mrb[0].mxu0
      %v3003 = vadd.f32 0.0, %v3002
      %v3004 = vpop.f32.mrb[0].mxu0
      %3005 = vdwg.mxu0
      %v3006 = vadd.f32 %v2796, %v2880
      %v3007 = vadd.f32 %v2797, %v2883
      %v3008 = vadd.f32 %v2798, %v2888
      %v3009 = vadd.f32 %v2799, %v2891
      %v3010 = vadd.f32 %v2800, %v2896
      %v3011 = vadd.f32 %v2801, %v2899
      %v3012 = vadd.f32 %v2802, %v2904
      %v3013 = vadd.f32 %v2803, %v2907
      %v3014 = vadd.f32 %v2804, %v2912
      %v3015 = vadd.f32 %v2805, %v2915
      %v3016 = vadd.f32 %v2806, %v2920
      %v3017 = vadd.f32 %v2807, %v2923
      %v3018 = vadd.f32 %v2808, %v2928
      %v3019 = vadd.f32 %v2809, %v2931
      %v3020 = vadd.f32 %v2810, %v2936
      %v3021 = vadd.f32 %v2811, %v2939
      %v3022 = vadd.f32 %v2812, %v2944
      %v3023 = vadd.f32 %v2813, %v2947
      %v3024 = vadd.f32 %v2814, %v2952
      %v3025 = vadd.f32 %v2815, %v2955
      %v3026 = vadd.f32 %v2816, %v2960
      %v3027 = vadd.f32 %v2817, %v2963
      %v3028 = vadd.f32 %v2818, %v2968
      %v3029 = vadd.f32 %v2819, %v2971
      %v3030 = vadd.f32 %v2820, %v2976
      %v3031 = vadd.f32 %v2821, %v2979
      %v3032 = vadd.f32 %v2822, %v2984
      %v3033 = vadd.f32 %v2823, %v2987
      %v3034 = vadd.f32 %v2824, %v2992
      %v3035 = vadd.f32 %v2825, %v2995
      %v3036 = vadd.f32 %v2826, %v3000
      %v3037 = vadd.f32 %v2827, %v3003
      %v3038 = vld [vmem:[%s3] sm:$0x1]
      %v3040 = vlaneseq
      %v3041 = vshrl.u32 %v3040, 7
      %v3042 = vsub.s32 0, %v3041
      %v3043 = vrot.slane %v3038, %v3042
      %v3045 = vadd.f32 %v3006, %v3043
      %v3046 = vadd.f32 %v3007, %v3043
      %v3047 = vadd.f32 %v3008, %v3043
      %v3048 = vadd.f32 %v3009, %v3043
      %v3049 = vadd.f32 %v3010, %v3043
      %v3050 = vadd.f32 %v3011, %v3043
      %v3051 = vadd.f32 %v3012, %v3043
      %v3052 = vadd.f32 %v3013, %v3043
      %v3053 = vadd.f32 %v3014, %v3043
      %v3054 = vadd.f32 %v3015, %v3043
      %v3055 = vadd.f32 %v3016, %v3043
      %v3056 = vadd.f32 %v3017, %v3043
      %v3057 = vadd.f32 %v3018, %v3043
      %v3058 = vadd.f32 %v3019, %v3043
      %v3059 = vadd.f32 %v3020, %v3043
      %v3060 = vadd.f32 %v3021, %v3043
      %v3061 = vadd.f32 %v3022, %v3043
      %v3062 = vadd.f32 %v3023, %v3043
      %v3063 = vadd.f32 %v3024, %v3043
      %v3064 = vadd.f32 %v3025, %v3043
      %v3065 = vadd.f32 %v3026, %v3043
      %v3066 = vadd.f32 %v3027, %v3043
      %v3067 = vadd.f32 %v3028, %v3043
      %v3068 = vadd.f32 %v3029, %v3043
      %v3069 = vadd.f32 %v3030, %v3043
      %v3070 = vadd.f32 %v3031, %v3043
      %v3071 = vadd.f32 %v3032, %v3043
      %v3072 = vadd.f32 %v3033, %v3043
      %v3073 = vadd.f32 %v3034, %v3043
      %v3074 = vadd.f32 %v3035, %v3043
      %v3075 = vadd.f32 %v3036, %v3043
      %v3076 = vadd.f32 %v3037, %v3043
      %v3077 = vmax.f32 %v3045, 0.0
      %v3078 = vmax.f32 %v3046, 0.0
      %v3079 = vmax.f32 %v3047, 0.0
      %v3080 = vmax.f32 %v3048, 0.0
      %v3081 = vmax.f32 %v3049, 0.0
      %v3082 = vmax.f32 %v3050, 0.0
      %v3083 = vmax.f32 %v3051, 0.0
      %v3084 = vmax.f32 %v3052, 0.0
      %v3085 = vmax.f32 %v3053, 0.0
      %v3086 = vmax.f32 %v3054, 0.0
      %v3087 = vmax.f32 %v3055, 0.0
      %v3088 = vmax.f32 %v3056, 0.0
      %v3089 = vmax.f32 %v3057, 0.0
      %v3090 = vmax.f32 %v3058, 0.0
      %v3091 = vmax.f32 %v3059, 0.0
      %v3092 = vmax.f32 %v3060, 0.0
      %v3093 = vmax.f32 %v3061, 0.0
      %v3094 = vmax.f32 %v3062, 0.0
      %v3095 = vmax.f32 %v3063, 0.0
      %v3096 = vmax.f32 %v3064, 0.0
      %v3097 = vmax.f32 %v3065, 0.0
      %v3098 = vmax.f32 %v3066, 0.0
      %v3099 = vmax.f32 %v3067, 0.0
      %v3100 = vmax.f32 %v3068, 0.0
      %v3101 = vmax.f32 %v3069, 0.0
      %v3102 = vmax.f32 %v3070, 0.0
      %v3103 = vmax.f32 %v3071, 0.0
      %v3104 = vmax.f32 %v3072, 0.0
      %v3105 = vmax.f32 %v3073, 0.0
      %v3106 = vmax.f32 %v3074, 0.0
      %v3107 = vmax.f32 %v3075, 0.0
      %v3108 = vmax.f32 %v3076, 0.0
      %3109 = vst [vmem:[%s316] sm:$0xff] %v3077
      %3110 = vst [vmem:[%s316 + $0x8] sm:$0xff] %v3078
      %3111 = vst [vmem:[%s316 + $0x10] sm:$0xff] %v3079
      %3112 = vst [vmem:[%s316 + $0x18] sm:$0xff] %v3080
      %3113 = vst [vmem:[%s316 + $0x20] sm:$0xff] %v3081
      %3114 = vst [vmem:[%s316 + $0x28] sm:$0xff] %v3082
      %3115 = vst [vmem:[%s316 + $0x30] sm:$0xff] %v3083
      %3116 = vst [vmem:[%s316 + $0x38] sm:$0xff] %v3084
      %3117 = vst [vmem:[%s316 + $0x40] sm:$0xff] %v3085
      %3118 = vst [vmem:[%s316 + $0x48] sm:$0xff] %v3086
      %3119 = vst [vmem:[%s316 + $0x50] sm:$0xff] %v3087
      %3120 = vst [vmem:[%s316 + $0x58] sm:$0xff] %v3088
      %3121 = vst [vmem:[%s316 + $0x60] sm:$0xff] %v3089
      %3122 = vst [vmem:[%s316 + $0x68] sm:$0xff] %v3090
      %3123 = vst [vmem:[%s316 + $0x70] sm:$0xff] %v3091
      %3124 = vst [vmem:[%s316 + $0x78] sm:$0xff] %v3092
      %3125 = vst [vmem:[%s316 + $0x80] sm:$0xff] %v3093
      %3126 = vst [vmem:[%s316 + $0x88] sm:$0xff] %v3094
      %3127 = vst [vmem:[%s316 + $0x90] sm:$0xff] %v3095
      %3128 = vst [vmem:[%s316 + $0x98] sm:$0xff] %v3096
      %3129 = vst [vmem:[%s316 + $0xa0] sm:$0xff] %v3097
      %3130 = vst [vmem:[%s316 + $0xa8] sm:$0xff] %v3098
      %3131 = vst [vmem:[%s316 + $0xb0] sm:$0xff] %v3099
      %3132 = vst [vmem:[%s316 + $0xb8] sm:$0xff] %v3100
      %3133 = vst [vmem:[%s316 + $0xc0] sm:$0xff] %v3101
      %3134 = vst [vmem:[%s316 + $0xc8] sm:$0xff] %v3102
      %3135 = vst [vmem:[%s316 + $0xd0] sm:$0xff] %v3103
      %3136 = vst [vmem:[%s316 + $0xd8] sm:$0xff] %v3104
      %3137 = vst [vmem:[%s316 + $0xe0] sm:$0xff] %v3105
      %3138 = vst [vmem:[%s316 + $0xe8] sm:$0xff] %v3106
      %3139 = vst [vmem:[%s316 + $0xf0] sm:$0xff] %v3107
      %3140 = vst [vmem:[%s316 + $0xf8] sm:$0xff] %v3108
      %s3141 = smul.u32 32, %s20
      %p3142 = scmp.lt.s32.totalorder %s19, 1
      %s3143 = scalar_select %p3142, %s19, 1
      %p3144 = scmp.lt.s32.totalorder %s3141, 31
      %s3145 = scalar_select %p3144, %s3141, 31
      %s3146 = smul.addr %s3143, 32
      %s3147 = sadd.s32 %s3145, %s3146
      %s3148 = smul.addr %s3147, 8
      %s3149 = scalar_lea.vmem %s4, %s3148
      // Predicated region
      $region37: #{conv_block_forward.1} parent=35 // pred_check
        %p3150 = pneg %p149
      $region38: #{conv_block_forward.1} parent=35 // pred_check_branch
        %3152 = sbr.rel (%p3150) target = $region40
      $region39: #{conv_block_forward.1} parent=35 // pred_region
        %s3153 = smul.u32 32, %s20
      $region40: #{conv_block_forward.1} parent=35 // pred_fallthru
        _
    $region36: #{conv_block_forward.1} parent=5 // pred_fallthru
      _
    %p3154 = scmp.le.s32.totalorder 2, %s10
    // Predicated region
    $region41: #{conv_block_forward.1} parent=5 // pred_check
      %p3155 = pneg %p3154
    $region42: #{conv_block_forward.1} parent=5 // pred_check_branch
      %3157 = sbr.rel (%p3155) target = $region44
    $region43: #{conv_block_forward.1} parent=5 // pred_region
      %s3158 = ssub.s32 %s10, 2
      // Predicated region
      $region45: #{conv_block_forward.1} parent=43 // pred_check
        %p3159 = pneg %p155
      $region46: #{conv_block_forward.1} parent=43 // pred_check_branch
        %3161 = sbr.rel (%p3159) target = $region48
      $region47: #{conv_block_forward.1} parent=43 // pred_region
        %s3162 = smul.u32 32, %s22
        %p3163 = scmp.lt.s32.totalorder %s21, 1
        %s3164 = scalar_select %p3163, %s21, 1
        %p3165 = scmp.lt.s32.totalorder %s3162, 31
        %s3166 = scalar_select %p3165, %s3162, 31
        %s3167 = smul.addr %s3164, 32
        %s3168 = sadd.s32 %s3166, %s3167
        %s3169 = smul.addr %s3168, 8
        %s3170 = scalar_lea.vmem %s4, %s3169
      $region48: #{conv_block_forward.1} parent=43 // pred_fallthru
        _
    $region44: #{conv_block_forward.1} parent=5 // pred_fallthru
      _
  $region6: #{conv_block_forward.1} parent=0 // loop_footer
    %s14 = sadd.s32 1, %s10
  $region7: #{conv_block_forward.1} parent=0 // loop_footer_branch
    %9 = sbr.rel target = $region3
  $region8: #{conv_block_forward.1} parent=0 // loop_exit
    _

</llo_original>
